<compile_context>
chip_gen: v6e
topology: v6e:2x2x1
jax: 0.10.0
libtpu: 0.0.40
codegen_flags: <defaults>
</compile_context>

<pallas_src>
import jax
import jax.numpy as jnp
from jax.experimental import pallas as pl
from jax.experimental.pallas import tpu as pltpu


def _head_kernel(lh_ref, cls4_ref, len_ref,
                 w_attn_ref,
                 gamma_c_ref, beta_c_ref, gamma_p_ref, beta_p_ref,
                 w1_c_ref, w1_p_ref, b1_ref, w2_ref, b2_ref,
                 logits_ref, weights_ref):
    lh = lh_ref[...]                                      # [Bb, S, H] f32
    Bb, S, H = lh.shape
    FH = cls4_ref.shape[-1]                               # 4*H
    D = FH + H                                            # 5*H
    S_PAD = weights_ref.shape[-1]

    # ---- attention pooling scores: VPU multiply + lane (XLU) reduce ------
    # Linear(H,1) without bias: the bias is constant across the softmax axis
    # and cancels exactly, so it is dropped.
    w_vec = w_attn_ref[...]                               # [1, H]
    s = jnp.sum(lh * w_vec[None, :, :], axis=-1)          # [Bb, S]

    # padding mask built in-kernel from lengths (no [B,S] mask DMA)
    pos = jax.lax.broadcasted_iota(jnp.int32, (Bb, S), 1)
    s = jnp.where(pos < len_ref[...], s, jnp.float32(-1e9))

    # softmax over the sequence; exact divide (weights are an exposed output)
    m = jnp.max(s, axis=-1, keepdims=True)
    e = jnp.exp(s - m)
    denom = jnp.sum(e, axis=-1, keepdims=True)
    w = e / denom                                          # [Bb, S]

    # lane-dense store of the attention weights (pad S -> S_PAD)
    if S_PAD > S:
        w_out = jnp.concatenate(
            [w, jnp.zeros((Bb, S_PAD - S), jnp.float32)], axis=-1)
    else:
        w_out = w
    weights_ref[...] = w_out

    # weighted pooling: VPU broadcast-multiply + sublane reduce over S
    pooled = jnp.sum(lh * w[:, :, None], axis=1)           # [Bb, H]

    # ---- LayerNorm over virtual concat [cls4 | pooled] (no 5H slab) ------
    cls4 = cls4_ref[...]                                    # [Bb, 4H]
    inv_d = 1.0 / D
    mu = (jnp.sum(cls4, axis=-1, keepdims=True)
          + jnp.sum(pooled, axis=-1, keepdims=True)) * inv_d
    var = (jnp.sum((cls4 - mu) ** 2, axis=-1, keepdims=True)
           + jnp.sum((pooled - mu) ** 2, axis=-1, keepdims=True)) * inv_d
    inv = jax.lax.rsqrt(var + 1e-5)                         # PyTorch eps
    cls4_ln = (cls4 - mu) * inv * gamma_c_ref[...] + beta_c_ref[...]
    pooled_ln = (pooled - mu) * inv * gamma_p_ref[...] + beta_p_ref[...]

    # ---- classifier: split Linear(5H,2H) -> ReLU -> Linear(2H, C_pad) ----
    h1 = (jnp.dot(cls4_ln, w1_c_ref[...], preferred_element_type=jnp.float32)
          + jnp.dot(pooled_ln, w1_p_ref[...], preferred_element_type=jnp.float32)
          + b1_ref[...])
    h1 = jnp.maximum(h1, 0.0)
    logits_ref[...] = (jnp.dot(h1, w2_ref[...], preferred_element_type=jnp.float32)
                       + b2_ref[...])                       # [Bb, 128]


def _pick_block_b(B):
    # 8-aligned batch blocks (sublane constraint on [Bb, 4H]/[Bb, 128] tiles);
    # prefer keeping >= 4 grid steps (megacore + pipeline overlap), else >= 2.
    candidates = [b for b in range(8, B + 1, 8) if B % b == 0]
    for min_steps in (4, 2):
        fits = [b for b in candidates if B // b >= min_steps]
        if fits:
            return max(fits)
    return candidates[-1] if candidates else B


def _pick_vmem_limit():
    # ~75% of physical VMEM, capped at 100 MiB:
    #   v5e/v6e (128 MiB) -> 96 MiB;  v7x (64 MiB per TC) -> 48 MiB.
    try:
        info = pltpu.get_tpu_info()
        cap = getattr(info, "vmem_capacity_bytes", None)
        if cap:
            return min(int(cap * 3 // 4), 100 * 1024 * 1024)
    except Exception:
        pass
    return 48 * 1024 * 1024  # safe on all current generations


def bert_head_forward(last_hidden, cls4, lengths, params, *, block_b=None):
    B, S, H = last_hidden.shape
    FH = 4 * H
    H2 = params["w1"].shape[-1]
    C = params["w2"].shape[-1]
    C_PAD = 128                                   # lane-dense logits; sliced below
    S_PAD = S if S % 128 == 0 else ((S + 127) // 128) * 128

    if block_b is None:
        block_b = _pick_block_b(B)
    assert B % block_b == 0, "batch must be divisible by the batch block"
    grid = (B // block_b,)

    # Split LayerNorm params / first classifier layer so the 5H concat never exists.
    gamma_c, gamma_p = params["gamma"][:, :FH], params["gamma"][:, FH:]
    beta_c, beta_p = params["beta"][:, :FH], params["beta"][:, FH:]
    w1_c, w1_p = params["w1"][:FH, :], params["w1"][FH:, :]

    # Zero-pad the tiny logits projection to a 128-wide lane-dense output.
    w2_pad = jnp.zeros((H2, C_PAD), jnp.float32).at[:, :C].set(params["w2"])
    b2_pad = jnp.zeros((1, C_PAD), jnp.float32).at[:, :C].set(params["b2"])

    lengths2d = lengths.reshape(B, 1).astype(jnp.int32)

    def batch_spec(shape):
        nd = len(shape)
        return pl.BlockSpec((block_b,) + tuple(shape[1:]),
                            lambda b, _nd=nd: (b,) + (0,) * (_nd - 1))

    def const_spec(shape):
        nd = len(shape)
        return pl.BlockSpec(tuple(shape), lambda b, _nd=nd: (0,) * _nd)

    in_specs = [
        batch_spec(last_hidden.shape),                       # last_hidden [B,S,H]
        batch_spec(cls4.shape),                              # cls4        [B,4H]
        batch_spec(lengths2d.shape),                         # lengths     [B,1]
        const_spec(params["w_attn"].shape),                  # w_attn      [1,H]
        const_spec(gamma_c.shape), const_spec(beta_c.shape),
        const_spec(gamma_p.shape), const_spec(beta_p.shape),
        const_spec(w1_c.shape), const_spec(w1_p.shape), const_spec(params["b1"].shape),
        const_spec(w2_pad.shape), const_spec(b2_pad.shape),
    ]
    out_specs = (
        pl.BlockSpec((block_b, C_PAD), lambda b: (b, 0)),    # padded logits
        pl.BlockSpec((block_b, S_PAD), lambda b: (b, 0)),    # padded attn weights
    )
    out_shape = (jax.ShapeDtypeStruct((B, C_PAD), jnp.float32),
                 jax.ShapeDtypeStruct((B, S_PAD), jnp.float32))

    logits_pad, weights_pad = pl.pallas_call(
        _head_kernel,
        grid=grid,
        out_shape=out_shape,
        in_specs=in_specs,
        out_specs=out_specs,
        compiler_params=pltpu.CompilerParams(
            dimension_semantics=("parallel",),      # batch blocks are independent
            vmem_limit_bytes=_pick_vmem_limit()),
    )(last_hidden, cls4, lengths2d,
      params["w_attn"],
      gamma_c, beta_c, gamma_p, beta_p,
      w1_c, w1_p, params["b1"], w2_pad, b2_pad)

    return logits_pad[:, :C], weights_pad[:, :S]


if __name__ == "__main__":
    key = jax.random.PRNGKey(0)
    B, S, H, C = 16, 8, 32, 3
    keys = jax.random.split(key, 10)

    # Synthetic "BERT" hidden states for the last 4 layers; layer -1 is
    # outputs.last_hidden_state.
    hs = [jax.random.normal(keys[i], (B, S, H), jnp.float32) for i in range(4)]
    last_hidden = hs[-1]
    # cls token of concat(last 4 layers) -> [B, 4H]
    cls4 = jnp.concatenate([h[:, 0, :] for h in hs], axis=-1)

    # padding structure: 1 for valid tokens, 0 for padding == positions < length
    lengths = jax.random.randint(keys[4], (B,), 1, S + 1)

    # Deterministic parameter init (shapes from the nn.Module __init__).
    params = {
        "w_attn": jax.random.normal(keys[5], (1, H), jnp.float32) * 0.1,   # Linear(H,1).weight
        # Linear(H,1).bias cancels in the softmax -> not consumed by the kernel.
        "b_attn": jax.random.normal(keys[6], (1, 1), jnp.float32) * 0.1,
        "gamma":  jnp.ones((1, 5 * H), jnp.float32),                       # LayerNorm weight
        "beta":   jnp.zeros((1, 5 * H), jnp.float32),                      # LayerNorm bias
        "w1": jax.random.normal(keys[7], (5 * H, 2 * H), jnp.float32) * 0.05,
        "b1": jnp.zeros((1, 2 * H), jnp.float32),
        "w2": jax.random.normal(keys[8], (2 * H, C), jnp.float32) * 0.05,
        "b2": jnp.zeros((1, C), jnp.float32),
    }

    logits, attn_weights = bert_head_forward(last_hidden, cls4, lengths, params)
    jax.block_until_ready((logits, attn_weights))
    # Model.forward also stores softmax(logits) as self.probabilities (glue).
    probabilities = jax.nn.softmax(logits, axis=1)
    jax.block_until_ready(probabilities)
    print("KERNEL_OK")
</pallas_src>

<mosaic_0001>
module attributes {stable_mosaic.version = 11 : i64} {
  func.func @_head_kernel(%arg0: i32, %arg1: memref<8x8x32xf32, #tpu.memory_space<vmem>>, %arg2: memref<8x128xf32, #tpu.memory_space<vmem>>, %arg3: memref<8x1xi32, #tpu.memory_space<vmem>>, %arg4: memref<1x32xf32, #tpu.memory_space<vmem>>, %arg5: memref<1x128xf32, #tpu.memory_space<vmem>>, %arg6: memref<1x128xf32, #tpu.memory_space<vmem>>, %arg7: memref<1x32xf32, #tpu.memory_space<vmem>>, %arg8: memref<1x32xf32, #tpu.memory_space<vmem>>, %arg9: memref<128x64xf32, #tpu.memory_space<vmem>>, %arg10: memref<32x64xf32, #tpu.memory_space<vmem>>, %arg11: memref<1x64xf32, #tpu.memory_space<vmem>>, %arg12: memref<64x128xf32, #tpu.memory_space<vmem>>, %arg13: memref<1x128xf32, #tpu.memory_space<vmem>>, %arg14: memref<8x128xf32, #tpu.memory_space<vmem>>, %arg15: memref<8x128xf32, #tpu.memory_space<vmem>>) attributes {dimension_semantics = [#tpu.dimension_semantics<parallel>], iteration_bounds = array<i64: 2>, scalar_prefetch = 0 : i64, scratch_operands = 0 : i64, tpu.core_type = #tpu.core_type<tc>, window_params = [{transform_indices = @transform_0, window_bounds = array<i64: 8, 8, 32>}, {transform_indices = @transform_1, window_bounds = array<i64: 8, 128>}, {transform_indices = @transform_2, window_bounds = array<i64: 8, 1>}, {pipeline_mode = #tpu.pipeline_mode<synchronous>, transform_indices = @transform_3, window_bounds = array<i64: 1, 32>}, {pipeline_mode = #tpu.pipeline_mode<synchronous>, transform_indices = @transform_4, window_bounds = array<i64: 1, 128>}, {pipeline_mode = #tpu.pipeline_mode<synchronous>, transform_indices = @transform_5, window_bounds = array<i64: 1, 128>}, {pipeline_mode = #tpu.pipeline_mode<synchronous>, transform_indices = @transform_6, window_bounds = array<i64: 1, 32>}, {pipeline_mode = #tpu.pipeline_mode<synchronous>, transform_indices = @transform_7, window_bounds = array<i64: 1, 32>}, {pipeline_mode = #tpu.pipeline_mode<synchronous>, transform_indices = @transform_8, window_bounds = array<i64: 128, 64>}, {pipeline_mode = #tpu.pipeline_mode<synchronous>, transform_indices = @transform_9, window_bounds = array<i64: 32, 64>}, {pipeline_mode = #tpu.pipeline_mode<synchronous>, transform_indices = @transform_10, window_bounds = array<i64: 1, 64>}, {pipeline_mode = #tpu.pipeline_mode<synchronous>, transform_indices = @transform_11, window_bounds = array<i64: 64, 128>}, {pipeline_mode = #tpu.pipeline_mode<synchronous>, transform_indices = @transform_12, window_bounds = array<i64: 1, 128>}, {transform_indices = @transform_13, window_bounds = array<i64: 8, 128>}, {transform_indices = @transform_14, window_bounds = array<i64: 8, 128>}]} {
    %c0 = arith.constant 0 : index
    %c0_0 = arith.constant 0 : index
    %c0_1 = arith.constant 0 : index
    %0 = vector.load %arg1[%c0, %c0_0, %c0_1] : memref<8x8x32xf32, #tpu.memory_space<vmem>>, vector<8x8x32xf32>
    %c0_2 = arith.constant 0 : index
    %c0_3 = arith.constant 0 : index
    %1 = vector.load %arg4[%c0_2, %c0_3] : memref<1x32xf32, #tpu.memory_space<vmem>>, vector<1x32xf32>
    %2 = vector.shape_cast %1 : vector<1x32xf32> to vector<1x1x32xf32>
    %3 = vector.broadcast %2 : vector<1x1x32xf32> to vector<8x8x32xf32>
    %4 = arith.mulf %0, %3 : vector<8x8x32xf32>
    %cst = arith.constant dense<0.000000e+00> : vector<8x8xf32>
    %5 = vector.multi_reduction <add>, %4, %cst [2] : vector<8x8x32xf32> to vector<8x8xf32>
    %6 = tpu.iota {dimensions = array<i32: 1>} : vector<8x8xi32>
    %c0_4 = arith.constant 0 : index
    %c0_5 = arith.constant 0 : index
    %7 = vector.load %arg3[%c0_4, %c0_5] : memref<8x1xi32, #tpu.memory_space<vmem>>, vector<8x1xi32>
    %8 = vector.broadcast %7 : vector<8x1xi32> to vector<8x8xi32>
    %9 = arith.cmpi slt, %6, %8 : vector<8x8xi32>
    %cst_6 = arith.constant -1.000000e+09 : f32
    %10 = vector.broadcast %cst_6 : f32 to vector<8x8xf32>
    %11 = arith.select %9, %5, %10 : vector<8x8xi1>, vector<8x8xf32>
    %cst_7 = arith.constant dense<0xFF800000> : vector<8xf32>
    %12 = vector.multi_reduction <maximumf>, %11, %cst_7 [1] : vector<8x8xf32> to vector<8xf32>
    %13 = vector.shape_cast %12 : vector<8xf32> to vector<8x1xf32>
    %14 = vector.broadcast %13 : vector<8x1xf32> to vector<8x8xf32>
    %15 = arith.subf %11, %14 : vector<8x8xf32>
    %16 = math.exp %15 : vector<8x8xf32>
    %cst_8 = arith.constant dense<0.000000e+00> : vector<8xf32>
    %17 = vector.multi_reduction <add>, %16, %cst_8 [1] : vector<8x8xf32> to vector<8xf32>
    %18 = vector.shape_cast %17 : vector<8xf32> to vector<8x1xf32>
    %19 = vector.broadcast %18 : vector<8x1xf32> to vector<8x8xf32>
    %20 = arith.divf %16, %19 : vector<8x8xf32>
    %cst_9 = arith.constant 0.000000e+00 : f32
    %21 = vector.broadcast %cst_9 : f32 to vector<8x120xf32>
    %22 = tpu.concatenate %20, %21 in 1 : vector<8x8xf32>, vector<8x120xf32> -> vector<8x128xf32>
    %c0_10 = arith.constant 0 : index
    %c0_11 = arith.constant 0 : index
    %23 = vector.load %arg15[%c0_10, %c0_11] : memref<8x128xf32, #tpu.memory_space<vmem>>, vector<8x128xf32>
    tpu.vector_store %arg15[%c0_10, %c0_11], %22 {strides = array<i32>} : memref<8x128xf32, #tpu.memory_space<vmem>>, vector<8x128xf32>,
    %24 = vector.shape_cast %20 : vector<8x8xf32> to vector<8x8x1xf32>
    %25 = vector.broadcast %24 : vector<8x8x1xf32> to vector<8x8x32xf32>
    %26 = arith.mulf %0, %25 : vector<8x8x32xf32>
    %cst_12 = arith.constant dense<0.000000e+00> : vector<8x32xf32>
    %27 = vector.multi_reduction <add>, %26, %cst_12 [1] : vector<8x8x32xf32> to vector<8x32xf32>
    %c0_13 = arith.constant 0 : index
    %c0_14 = arith.constant 0 : index
    %28 = vector.load %arg2[%c0_13, %c0_14] : memref<8x128xf32, #tpu.memory_space<vmem>>, vector<8x128xf32>
    %cst_15 = arith.constant dense<0.000000e+00> : vector<8xf32>
    %29 = vector.multi_reduction <add>, %28, %cst_15 [1] : vector<8x128xf32> to vector<8xf32>
    %30 = vector.shape_cast %29 : vector<8xf32> to vector<8x1xf32>
    %cst_16 = arith.constant dense<0.000000e+00> : vector<8xf32>
    %31 = vector.multi_reduction <add>, %27, %cst_16 [1] : vector<8x32xf32> to vector<8xf32>
    %32 = vector.shape_cast %31 : vector<8xf32> to vector<8x1xf32>
    %33 = arith.addf %30, %32 : vector<8x1xf32>
    %cst_17 = arith.constant 6.250000e-03 : f32
    %34 = vector.broadcast %cst_17 : f32 to vector<8x1xf32>
    %35 = arith.mulf %33, %34 : vector<8x1xf32>
    %36 = vector.broadcast %35 : vector<8x1xf32> to vector<8x128xf32>
    %37 = arith.subf %28, %36 : vector<8x128xf32>
    %38 = arith.mulf %37, %37 : vector<8x128xf32>
    %cst_18 = arith.constant dense<0.000000e+00> : vector<8xf32>
    %39 = vector.multi_reduction <add>, %38, %cst_18 [1] : vector<8x128xf32> to vector<8xf32>
    %40 = vector.shape_cast %39 : vector<8xf32> to vector<8x1xf32>
    %41 = vector.broadcast %35 : vector<8x1xf32> to vector<8x32xf32>
    %42 = arith.subf %27, %41 : vector<8x32xf32>
    %43 = arith.mulf %42, %42 : vector<8x32xf32>
    %cst_19 = arith.constant dense<0.000000e+00> : vector<8xf32>
    %44 = vector.multi_reduction <add>, %43, %cst_19 [1] : vector<8x32xf32> to vector<8xf32>
    %45 = vector.shape_cast %44 : vector<8xf32> to vector<8x1xf32>
    %46 = arith.addf %40, %45 : vector<8x1xf32>
    %cst_20 = arith.constant 6.250000e-03 : f32
    %47 = vector.broadcast %cst_20 : f32 to vector<8x1xf32>
    %48 = arith.mulf %46, %47 : vector<8x1xf32>
    %cst_21 = arith.constant 9.99999974E-6 : f32
    %49 = vector.broadcast %cst_21 : f32 to vector<8x1xf32>
    %50 = arith.addf %48, %49 : vector<8x1xf32>
    %51 = math.rsqrt %50 : vector<8x1xf32>
    %52 = vector.broadcast %35 : vector<8x1xf32> to vector<8x128xf32>
    %53 = arith.subf %28, %52 : vector<8x128xf32>
    %54 = vector.broadcast %51 : vector<8x1xf32> to vector<8x128xf32>
    %55 = arith.mulf %53, %54 : vector<8x128xf32>
    %c0_22 = arith.constant 0 : index
    %c0_23 = arith.constant 0 : index
    %56 = vector.load %arg5[%c0_22, %c0_23] : memref<1x128xf32, #tpu.memory_space<vmem>>, vector<1x128xf32>
    %57 = vector.broadcast %56 : vector<1x128xf32> to vector<8x128xf32>
    %58 = arith.mulf %55, %57 : vector<8x128xf32>
    %c0_24 = arith.constant 0 : index
    %c0_25 = arith.constant 0 : index
    %59 = vector.load %arg6[%c0_24, %c0_25] : memref<1x128xf32, #tpu.memory_space<vmem>>, vector<1x128xf32>
    %60 = vector.broadcast %59 : vector<1x128xf32> to vector<8x128xf32>
    %61 = arith.addf %58, %60 : vector<8x128xf32>
    %62 = vector.broadcast %35 : vector<8x1xf32> to vector<8x32xf32>
    %63 = arith.subf %27, %62 : vector<8x32xf32>
    %64 = vector.broadcast %51 : vector<8x1xf32> to vector<8x32xf32>
    %65 = arith.mulf %63, %64 : vector<8x32xf32>
    %c0_26 = arith.constant 0 : index
    %c0_27 = arith.constant 0 : index
    %66 = vector.load %arg7[%c0_26, %c0_27] : memref<1x32xf32, #tpu.memory_space<vmem>>, vector<1x32xf32>
    %67 = vector.broadcast %66 : vector<1x32xf32> to vector<8x32xf32>
    %68 = arith.mulf %65, %67 : vector<8x32xf32>
    %c0_28 = arith.constant 0 : index
    %c0_29 = arith.constant 0 : index
    %69 = vector.load %arg8[%c0_28, %c0_29] : memref<1x32xf32, #tpu.memory_space<vmem>>, vector<1x32xf32>
    %70 = vector.broadcast %69 : vector<1x32xf32> to vector<8x32xf32>
    %71 = arith.addf %68, %70 : vector<8x32xf32>
    %c0_30 = arith.constant 0 : index
    %c0_31 = arith.constant 0 : index
    %72 = vector.load %arg9[%c0_30, %c0_31] : memref<128x64xf32, #tpu.memory_space<vmem>>, vector<128x64xf32>
    %cst_32 = arith.constant dense<0.000000e+00> : vector<8x64xf32>
    %73 = tpu.matmul %61, %72, %cst_32 {dimension_numbers = #tpu.dot_dimension_numbers<[1], [0], [0], [1], [0, 0, 1, 1], [], []>} : vector<8x128xf32>, vector<128x64xf32>, vector<8x64xf32> -> vector<8x64xf32>
    %c0_33 = arith.constant 0 : index
    %c0_34 = arith.constant 0 : index
    %74 = vector.load %arg10[%c0_33, %c0_34] : memref<32x64xf32, #tpu.memory_space<vmem>>, vector<32x64xf32>
    %cst_35 = arith.constant dense<0.000000e+00> : vector<8x64xf32>
    %75 = tpu.matmul %71, %74, %cst_35 {dimension_numbers = #tpu.dot_dimension_numbers<[1], [0], [0], [1], [0, 0, 1, 1], [], []>} : vector<8x32xf32>, vector<32x64xf32>, vector<8x64xf32> -> vector<8x64xf32>
    %76 = arith.addf %73, %75 : vector<8x64xf32>
    %c0_36 = arith.constant 0 : index
    %c0_37 = arith.constant 0 : index
    %77 = vector.load %arg11[%c0_36, %c0_37] : memref<1x64xf32, #tpu.memory_space<vmem>>, vector<1x64xf32>
    %78 = vector.broadcast %77 : vector<1x64xf32> to vector<8x64xf32>
    %79 = arith.addf %76, %78 : vector<8x64xf32>
    %cst_38 = arith.constant 0.000000e+00 : f32
    %80 = vector.broadcast %cst_38 : f32 to vector<8x64xf32>
    %81 = arith.maximumf %79, %80 : vector<8x64xf32>
    %c0_39 = arith.constant 0 : index
    %c0_40 = arith.constant 0 : index
    %82 = vector.load %arg12[%c0_39, %c0_40] : memref<64x128xf32, #tpu.memory_space<vmem>>, vector<64x128xf32>
    %cst_41 = arith.constant dense<0.000000e+00> : vector<8x128xf32>
    %83 = tpu.matmul %81, %82, %cst_41 {dimension_numbers = #tpu.dot_dimension_numbers<[1], [0], [0], [1], [0, 0, 1, 1], [], []>} : vector<8x64xf32>, vector<64x128xf32>, vector<8x128xf32> -> vector<8x128xf32>
    %c0_42 = arith.constant 0 : index
    %c0_43 = arith.constant 0 : index
    %84 = vector.load %arg13[%c0_42, %c0_43] : memref<1x128xf32, #tpu.memory_space<vmem>>, vector<1x128xf32>
    %85 = vector.broadcast %84 : vector<1x128xf32> to vector<8x128xf32>
    %86 = arith.addf %83, %85 : vector<8x128xf32>
    %c0_44 = arith.constant 0 : index
    %c0_45 = arith.constant 0 : index
    %87 = vector.load %arg14[%c0_44, %c0_45] : memref<8x128xf32, #tpu.memory_space<vmem>>, vector<8x128xf32>
    tpu.vector_store %arg14[%c0_44, %c0_45], %86 {strides = array<i32>} : memref<8x128xf32, #tpu.memory_space<vmem>>, vector<8x128xf32>,
    return
  }
  func.func @transform_0(%arg0: i32) -> (i32, i32, i32) {
    %c0_i32 = arith.constant 0 : i32
    %c0_i32_0 = arith.constant 0 : i32
    %c0_i32_1 = arith.constant 0 : i32
    return %arg0, %c0_i32, %c0_i32_0 : i32, i32, i32
  }
  func.func @transform_1(%arg0: i32) -> (i32, i32) {
    %c0_i32 = arith.constant 0 : i32
    %c0_i32_0 = arith.constant 0 : i32
    return %arg0, %c0_i32 : i32, i32
  }
  func.func @transform_2(%arg0: i32) -> (i32, i32) {
    %c0_i32 = arith.constant 0 : i32
    %c0_i32_0 = arith.constant 0 : i32
    return %arg0, %c0_i32 : i32, i32
  }
  func.func @transform_3(%arg0: i32) -> (i32, i32) {
    %c0_i32 = arith.constant 0 : i32
    %c0_i32_0 = arith.constant 0 : i32
    %c0_i32_1 = arith.constant 0 : i32
    return %c0_i32, %c0_i32_0 : i32, i32
  }
  func.func @transform_4(%arg0: i32) -> (i32, i32) {
    %c0_i32 = arith.constant 0 : i32
    %c0_i32_0 = arith.constant 0 : i32
    %c0_i32_1 = arith.constant 0 : i32
    return %c0_i32, %c0_i32_0 : i32, i32
  }
  func.func @transform_5(%arg0: i32) -> (i32, i32) {
    %c0_i32 = arith.constant 0 : i32
    %c0_i32_0 = arith.constant 0 : i32
    %c0_i32_1 = arith.constant 0 : i32
    return %c0_i32, %c0_i32_0 : i32, i32
  }
  func.func @transform_6(%arg0: i32) -> (i32, i32) {
    %c0_i32 = arith.constant 0 : i32
    %c0_i32_0 = arith.constant 0 : i32
    %c0_i32_1 = arith.constant 0 : i32
    return %c0_i32, %c0_i32_0 : i32, i32
  }
  func.func @transform_7(%arg0: i32) -> (i32, i32) {
    %c0_i32 = arith.constant 0 : i32
    %c0_i32_0 = arith.constant 0 : i32
    %c0_i32_1 = arith.constant 0 : i32
    return %c0_i32, %c0_i32_0 : i32, i32
  }
  func.func @transform_8(%arg0: i32) -> (i32, i32) {
    %c0_i32 = arith.constant 0 : i32
    %c0_i32_0 = arith.constant 0 : i32
    %c0_i32_1 = arith.constant 0 : i32
    return %c0_i32, %c0_i32_0 : i32, i32
  }
  func.func @transform_9(%arg0: i32) -> (i32, i32) {
    %c0_i32 = arith.constant 0 : i32
    %c0_i32_0 = arith.constant 0 : i32
    %c0_i32_1 = arith.constant 0 : i32
    return %c0_i32, %c0_i32_0 : i32, i32
  }
  func.func @transform_10(%arg0: i32) -> (i32, i32) {
    %c0_i32 = arith.constant 0 : i32
    %c0_i32_0 = arith.constant 0 : i32
    %c0_i32_1 = arith.constant 0 : i32
    return %c0_i32, %c0_i32_0 : i32, i32
  }
  func.func @transform_11(%arg0: i32) -> (i32, i32) {
    %c0_i32 = arith.constant 0 : i32
    %c0_i32_0 = arith.constant 0 : i32
    %c0_i32_1 = arith.constant 0 : i32
    return %c0_i32, %c0_i32_0 : i32, i32
  }
  func.func @transform_12(%arg0: i32) -> (i32, i32) {
    %c0_i32 = arith.constant 0 : i32
    %c0_i32_0 = arith.constant 0 : i32
    %c0_i32_1 = arith.constant 0 : i32
    return %c0_i32, %c0_i32_0 : i32, i32
  }
  func.func @transform_13(%arg0: i32) -> (i32, i32) {
    %c0_i32 = arith.constant 0 : i32
    %c0_i32_0 = arith.constant 0 : i32
    return %arg0, %c0_i32 : i32, i32
  }
  func.func @transform_14(%arg0: i32) -> (i32, i32) {
    %c0_i32 = arith.constant 0 : i32
    %c0_i32_0 = arith.constant 0 : i32
    return %arg0, %c0_i32 : i32, i32
  }
}

</mosaic_0001>

<llo_original>
// kernel: tpu_custom_call.1
$region0: #{tpu_custom_call.1}
  #allocation0 [shape = 'u32[]', space=smem, size = 0x4, offset = 0x4, fixed_abs, tag = 'smem constant byte address 0x4 - core index']
  #allocation1 [shape = 'u32[144,128]{1,0:T(1,128)}', space=vmem, size = 0x12000, scoped, tag = 'internal scratch']
  %s0 = inlined_call_operand.vmem [shape: f32[16,8,32], index: 0, kind: input, shape index: {}]
  %s1 = inlined_call_operand.vmem [shape: f32[16,128], index: 1, kind: input, shape index: {}]
  %s2 = inlined_call_operand.vmem [shape: s32[16,1], index: 2, kind: input, shape index: {}]
  %s3 = inlined_call_operand.vmem [shape: f32[1,32], index: 3, kind: input, shape index: {}]
  %s4 = inlined_call_operand.vmem [shape: f32[1,128], index: 4, kind: input, shape index: {}]
  %s5 = inlined_call_operand.vmem [shape: f32[1,128], index: 5, kind: input, shape index: {}]
  %s6 = inlined_call_operand.vmem [shape: f32[1,32], index: 6, kind: input, shape index: {}]
  %s7 = inlined_call_operand.vmem [shape: f32[1,32], index: 7, kind: input, shape index: {}]
  %s8 = inlined_call_operand.vmem [shape: f32[128,64], index: 8, kind: input, shape index: {}]
  %s9 = inlined_call_operand.hbm [shape: f32[32,64], index: 9, kind: input, shape index: {}]
  %s10 = inlined_call_operand.vmem [shape: f32[1,64], index: 10, kind: input, shape index: {}]
  %s11 = inlined_call_operand.vmem [shape: f32[64,128], index: 11, kind: input, shape index: {}]
  %s12 = inlined_call_operand.vmem [shape: f32[1,128], index: 12, kind: input, shape index: {}]
  %s13 = inlined_call_operand.hbm [shape: f32[16,128], index: 13, kind: output, shape index: {0}]
  %s14 = inlined_call_operand.hbm [shape: f32[16,128], index: 14, kind: output, shape index: {1}]
  %15 = xla_tuple %s13, %s14
  %s16 = sld [smem:[#allocation0]]
  $region97: #{tpu_custom_call.1} parent=0
    _
  %s18 = ssub.s32 1, %s16
  %s19 = scalar_select 0, %s18, %s16
  $region1: #{tpu_custom_call.1} parent=0
    #allocation2 [shape = 'u8[16384]{0}', space=vmem, size = 0x4000, scoped, tag = 'input window, operand 9, single buffered']
    #allocation3 [shape = 's32[2]{0}', space=sflag, size = 0x8, scoped, tag = 'scoped memory for tpu_custom_call.1']
    #allocation4 [shape = 's32[2]{0}', space=sflag, size = 0x8, scoped, tag = 'scoped memory for tpu_custom_call.1']
    #allocation5 [shape = 'u8[8192]{0}', space=vmem, size = 0x2000, scoped, tag = 'output window, operand 0']
    #allocation6 [shape = 'u8[8192]{0}', space=vmem, size = 0x2000, scoped, tag = 'output window, operand 1']
    #allocation7 [shape = 's32[2]{0}', space=sflag, size = 0x8, scoped, tag = 'scoped memory for tpu_custom_call.1']
    %20 = vsyncpa [#allocation3], 0
    %21 = vsyncpa [#allocation4], 0
    %s22 = scalar_lea.sflag [#allocation4], 1
    %23 = vsyncpa %s22, 0
    %24 = vsyncpa [#allocation7], 0
    %s25 = scalar_lea.sflag [#allocation7], 1
    %26 = vsyncpa %s25, 0
    loop: start=0, step=1, limit=4
    $region2: #{tpu_custom_call.1} parent=1 // loop_pre_header
      _
    $region3: #{tpu_custom_call.1} parent=1 // loop_header
      %s28 = sphi 0, %s32
      %p29 = scmp.ge.s32.totalorder %s28, 4
      %s38 = sphi 0, %s40
      %s41 = sphi 0, %s38
      %s42 = sphi 0, %s41
      %s58 = sphi 0, %s42
      %s64 = sphi 0, %s66
      %s67 = sphi 0, %s64
      %s68 = sphi 0, %s67
      %s84 = sphi 0, %s68
      %s90 = sphi 0, %s92
      %s93 = sphi 0, %s90
      %s94 = sphi 0, %s93
      %s110 = sphi 0, %s94
      %s114 = sphi 0, %s114
      %s116 = sphi 0, %s114
      %s117 = sphi 0, %s116
      %s131 = sphi 0, %s117
      %s135 = sphi 0, %s135
      %s137 = sphi 0, %s135
      %s138 = sphi 0, %s137
      %s152 = sphi 0, %s138
      %s156 = sphi 0, %s156
      %s158 = sphi 0, %s156
      %s159 = sphi 0, %s158
      %s173 = sphi 0, %s159
      %s177 = sphi 0, %s177
      %s179 = sphi 0, %s177
      %s180 = sphi 0, %s179
      %s194 = sphi 0, %s180
      %s198 = sphi 0, %s198
      %s200 = sphi 0, %s198
      %s201 = sphi 0, %s200
      %s215 = sphi 0, %s201
      %s219 = sphi 0, %s219
      %s221 = sphi 0, %s219
      %s222 = sphi 0, %s221
      %s236 = sphi 0, %s222
      %s240 = sphi 0, %s240
      %s242 = sphi 0, %s240
      %s243 = sphi 0, %s242
      %s257 = sphi 0, %s243
      %s261 = sphi 0, %s261
      %s263 = sphi 0, %s261
      %s264 = sphi 0, %s263
      %s278 = sphi 0, %s264
      %s282 = sphi 0, %s282
      %s284 = sphi 0, %s282
      %s285 = sphi 0, %s284
      %s299 = sphi 0, %s285
      %s303 = sphi 0, %s303
      %s305 = sphi 0, %s303
      %s306 = sphi 0, %s305
      %s320 = sphi 0, %s306
      %s326 = sphi 0, %s328
      %s329 = sphi 0, %s326
      %s330 = sphi 0, %s329
      %s346 = sphi 0, %s330
      %s352 = sphi 0, %s354
      %s355 = sphi 0, %s352
      %s356 = sphi 0, %s355
      %s372 = sphi 0, %s356
    $region4: #{tpu_custom_call.1} parent=1 // loop_header_branch
      %31 = sbr.rel (%p29) target = $region8
    $region5: #{tpu_custom_call.1} parent=1 // loop_body
      %s33 = ssub.s32 %s28, 1
      %s34 = ssub.s32 %s28, 2
      %s35 = sadd.s32 %s28, 1
      %s36 = ssub.s32 %s28, %s35
      %p37 = scmp.eq.s32.totalorder %s36, 0
      %s39 = sadd.s32 %s38, 1
      %s40 = scalar_select %p37, %s38, %s39
      %p43 = pneg %p37
      %p44 = scmp.eq.s32.totalorder %s28, 1
      %p45 = por %p43, %p44
      %p46 = scmp.ne.s32.totalorder %s38, %s41
      %p47 = scmp.eq.s32.totalorder %s28, 0
      %p48 = por %p46, %p47
      %p49 = scmp.ne.s32.totalorder %s38, %s41
      %p50 = scmp.eq.s32.totalorder %s33, 1
      %p51 = por %p49, %p50
      %p52 = scmp.ne.s32.totalorder %s41, %s42
      %p53 = scmp.eq.s32.totalorder %s33, 0
      %p54 = por %p52, %p53
      %p55 = scmp.ne.s32.totalorder %s41, %s42
      %p56 = scmp.eq.s32.totalorder %s34, 1
      %p57 = por %p55, %p56
      %p59 = scmp.ne.s32.totalorder %s42, %s58
      %p60 = scmp.eq.s32.totalorder %s34, 0
      %p61 = por %p59, %p60
      %s62 = ssub.s32 %s28, %s35
      %p63 = scmp.eq.s32.totalorder %s62, 0
      %s65 = sadd.s32 %s64, 1
      %s66 = scalar_select %p63, %s64, %s65
      %p69 = pneg %p63
      %p70 = scmp.eq.s32.totalorder %s28, 1
      %p71 = por %p69, %p70
      %p72 = scmp.ne.s32.totalorder %s64, %s67
      %p73 = scmp.eq.s32.totalorder %s28, 0
      %p74 = por %p72, %p73
      %p75 = scmp.ne.s32.totalorder %s64, %s67
      %p76 = scmp.eq.s32.totalorder %s33, 1
      %p77 = por %p75, %p76
      %p78 = scmp.ne.s32.totalorder %s67, %s68
      %p79 = scmp.eq.s32.totalorder %s33, 0
      %p80 = por %p78, %p79
      %p81 = scmp.ne.s32.totalorder %s67, %s68
      %p82 = scmp.eq.s32.totalorder %s34, 1
      %p83 = por %p81, %p82
      %p85 = scmp.ne.s32.totalorder %s68, %s84
      %p86 = scmp.eq.s32.totalorder %s34, 0
      %p87 = por %p85, %p86
      %s88 = ssub.s32 %s28, %s35
      %p89 = scmp.eq.s32.totalorder %s88, 0
      %s91 = sadd.s32 %s90, 1
      %s92 = scalar_select %p89, %s90, %s91
      %p95 = pneg %p89
      %p96 = scmp.eq.s32.totalorder %s28, 1
      %p97 = por %p95, %p96
      %p98 = scmp.ne.s32.totalorder %s90, %s93
      %p99 = scmp.eq.s32.totalorder %s28, 0
      %p100 = por %p98, %p99
      %p101 = scmp.ne.s32.totalorder %s90, %s93
      %p102 = scmp.eq.s32.totalorder %s33, 1
      %p103 = por %p101, %p102
      %p104 = scmp.ne.s32.totalorder %s93, %s94
      %p105 = scmp.eq.s32.totalorder %s33, 0
      %p106 = por %p104, %p105
      %p107 = scmp.ne.s32.totalorder %s93, %s94
      %p108 = scmp.eq.s32.totalorder %s34, 1
      %p109 = por %p107, %p108
      %p111 = scmp.ne.s32.totalorder %s94, %s110
      %p112 = scmp.eq.s32.totalorder %s34, 0
      %p113 = por %p111, %p112
      %s115 = sadd.s32 %s114, 1
      %p118 = scmp.eq.s32.totalorder %s28, 1
      %p119 = scmp.ne.s32.totalorder %s114, %s116
      %p120 = scmp.eq.s32.totalorder %s28, 0
      %p121 = por %p119, %p120
      %p122 = scmp.ne.s32.totalorder %s114, %s116
      %p123 = scmp.eq.s32.totalorder %s33, 1
      %p124 = por %p122, %p123
      %p125 = scmp.ne.s32.totalorder %s116, %s117
      %p126 = scmp.eq.s32.totalorder %s33, 0
      %p127 = por %p125, %p126
      %p128 = scmp.ne.s32.totalorder %s116, %s117
      %p129 = scmp.eq.s32.totalorder %s34, 1
      %p130 = por %p128, %p129
      %p132 = scmp.ne.s32.totalorder %s117, %s131
      %p133 = scmp.eq.s32.totalorder %s34, 0
      %p134 = por %p132, %p133
      %s136 = sadd.s32 %s135, 1
      %p139 = scmp.eq.s32.totalorder %s28, 1
      %p140 = scmp.ne.s32.totalorder %s135, %s137
      %p141 = scmp.eq.s32.totalorder %s28, 0
      %p142 = por %p140, %p141
      %p143 = scmp.ne.s32.totalorder %s135, %s137
      %p144 = scmp.eq.s32.totalorder %s33, 1
      %p145 = por %p143, %p144
      %p146 = scmp.ne.s32.totalorder %s137, %s138
      %p147 = scmp.eq.s32.totalorder %s33, 0
      %p148 = por %p146, %p147
      %p149 = scmp.ne.s32.totalorder %s137, %s138
      %p150 = scmp.eq.s32.totalorder %s34, 1
      %p151 = por %p149, %p150
      %p153 = scmp.ne.s32.totalorder %s138, %s152
      %p154 = scmp.eq.s32.totalorder %s34, 0
      %p155 = por %p153, %p154
      %s157 = sadd.s32 %s156, 1
      %p160 = scmp.eq.s32.totalorder %s28, 1
      %p161 = scmp.ne.s32.totalorder %s156, %s158
      %p162 = scmp.eq.s32.totalorder %s28, 0
      %p163 = por %p161, %p162
      %p164 = scmp.ne.s32.totalorder %s156, %s158
      %p165 = scmp.eq.s32.totalorder %s33, 1
      %p166 = por %p164, %p165
      %p167 = scmp.ne.s32.totalorder %s158, %s159
      %p168 = scmp.eq.s32.totalorder %s33, 0
      %p169 = por %p167, %p168
      %p170 = scmp.ne.s32.totalorder %s158, %s159
      %p171 = scmp.eq.s32.totalorder %s34, 1
      %p172 = por %p170, %p171
      %p174 = scmp.ne.s32.totalorder %s159, %s173
      %p175 = scmp.eq.s32.totalorder %s34, 0
      %p176 = por %p174, %p175
      %s178 = sadd.s32 %s177, 1
      %p181 = scmp.eq.s32.totalorder %s28, 1
      %p182 = scmp.ne.s32.totalorder %s177, %s179
      %p183 = scmp.eq.s32.totalorder %s28, 0
      %p184 = por %p182, %p183
      %p185 = scmp.ne.s32.totalorder %s177, %s179
      %p186 = scmp.eq.s32.totalorder %s33, 1
      %p187 = por %p185, %p186
      %p188 = scmp.ne.s32.totalorder %s179, %s180
      %p189 = scmp.eq.s32.totalorder %s33, 0
      %p190 = por %p188, %p189
      %p191 = scmp.ne.s32.totalorder %s179, %s180
      %p192 = scmp.eq.s32.totalorder %s34, 1
      %p193 = por %p191, %p192
      %p195 = scmp.ne.s32.totalorder %s180, %s194
      %p196 = scmp.eq.s32.totalorder %s34, 0
      %p197 = por %p195, %p196
      %s199 = sadd.s32 %s198, 1
      %p202 = scmp.eq.s32.totalorder %s28, 1
      %p203 = scmp.ne.s32.totalorder %s198, %s200
      %p204 = scmp.eq.s32.totalorder %s28, 0
      %p205 = por %p203, %p204
      %p206 = scmp.ne.s32.totalorder %s198, %s200
      %p207 = scmp.eq.s32.totalorder %s33, 1
      %p208 = por %p206, %p207
      %p209 = scmp.ne.s32.totalorder %s200, %s201
      %p210 = scmp.eq.s32.totalorder %s33, 0
      %p211 = por %p209, %p210
      %p212 = scmp.ne.s32.totalorder %s200, %s201
      %p213 = scmp.eq.s32.totalorder %s34, 1
      %p214 = por %p212, %p213
      %p216 = scmp.ne.s32.totalorder %s201, %s215
      %p217 = scmp.eq.s32.totalorder %s34, 0
      %p218 = por %p216, %p217
      %s220 = sadd.s32 %s219, 1
      %p223 = scmp.eq.s32.totalorder %s28, 1
      %p224 = scmp.ne.s32.totalorder %s219, %s221
      %p225 = scmp.eq.s32.totalorder %s28, 0
      %p226 = por %p224, %p225
      %p227 = scmp.ne.s32.totalorder %s219, %s221
      %p228 = scmp.eq.s32.totalorder %s33, 1
      %p229 = por %p227, %p228
      %p230 = scmp.ne.s32.totalorder %s221, %s222
      %p231 = scmp.eq.s32.totalorder %s33, 0
      %p232 = por %p230, %p231
      %p233 = scmp.ne.s32.totalorder %s221, %s222
      %p234 = scmp.eq.s32.totalorder %s34, 1
      %p235 = por %p233, %p234
      %p237 = scmp.ne.s32.totalorder %s222, %s236
      %p238 = scmp.eq.s32.totalorder %s34, 0
      %p239 = por %p237, %p238
      %s241 = sadd.s32 %s240, 1
      %p244 = scmp.eq.s32.totalorder %s28, 1
      %p245 = scmp.ne.s32.totalorder %s240, %s242
      %p246 = scmp.eq.s32.totalorder %s28, 0
      %p247 = por %p245, %p246
      %p248 = scmp.ne.s32.totalorder %s240, %s242
      %p249 = scmp.eq.s32.totalorder %s33, 1
      %p250 = por %p248, %p249
      %p251 = scmp.ne.s32.totalorder %s242, %s243
      %p252 = scmp.eq.s32.totalorder %s33, 0
      %p253 = por %p251, %p252
      %p254 = scmp.ne.s32.totalorder %s242, %s243
      %p255 = scmp.eq.s32.totalorder %s34, 1
      %p256 = por %p254, %p255
      %p258 = scmp.ne.s32.totalorder %s243, %s257
      %p259 = scmp.eq.s32.totalorder %s34, 0
      %p260 = por %p258, %p259
      %s262 = sadd.s32 %s261, 1
      %p265 = scmp.eq.s32.totalorder %s28, 1
      %p266 = scmp.ne.s32.totalorder %s261, %s263
      %p267 = scmp.eq.s32.totalorder %s28, 0
      %p268 = por %p266, %p267
      %p269 = scmp.ne.s32.totalorder %s261, %s263
      %p270 = scmp.eq.s32.totalorder %s33, 1
      %p271 = por %p269, %p270
      %p272 = scmp.ne.s32.totalorder %s263, %s264
      %p273 = scmp.eq.s32.totalorder %s33, 0
      %p274 = por %p272, %p273
      %p275 = scmp.ne.s32.totalorder %s263, %s264
      %p276 = scmp.eq.s32.totalorder %s34, 1
      %p277 = por %p275, %p276
      %p279 = scmp.ne.s32.totalorder %s264, %s278
      %p280 = scmp.eq.s32.totalorder %s34, 0
      %p281 = por %p279, %p280
      %s283 = sadd.s32 %s282, 1
      %p286 = scmp.eq.s32.totalorder %s28, 1
      %p287 = scmp.ne.s32.totalorder %s282, %s284
      %p288 = scmp.eq.s32.totalorder %s28, 0
      %p289 = por %p287, %p288
      %p290 = scmp.ne.s32.totalorder %s282, %s284
      %p291 = scmp.eq.s32.totalorder %s33, 1
      %p292 = por %p290, %p291
      %p293 = scmp.ne.s32.totalorder %s284, %s285
      %p294 = scmp.eq.s32.totalorder %s33, 0
      %p295 = por %p293, %p294
      %p296 = scmp.ne.s32.totalorder %s284, %s285
      %p297 = scmp.eq.s32.totalorder %s34, 1
      %p298 = por %p296, %p297
      %p300 = scmp.ne.s32.totalorder %s285, %s299
      %p301 = scmp.eq.s32.totalorder %s34, 0
      %p302 = por %p300, %p301
      %s304 = sadd.s32 %s303, 1
      %p307 = scmp.eq.s32.totalorder %s28, 1
      %p308 = scmp.ne.s32.totalorder %s303, %s305
      %p309 = scmp.eq.s32.totalorder %s28, 0
      %p310 = por %p308, %p309
      %p311 = scmp.ne.s32.totalorder %s303, %s305
      %p312 = scmp.eq.s32.totalorder %s33, 1
      %p313 = por %p311, %p312
      %p314 = scmp.ne.s32.totalorder %s305, %s306
      %p315 = scmp.eq.s32.totalorder %s33, 0
      %p316 = por %p314, %p315
      %p317 = scmp.ne.s32.totalorder %s305, %s306
      %p318 = scmp.eq.s32.totalorder %s34, 1
      %p319 = por %p317, %p318
      %p321 = scmp.ne.s32.totalorder %s306, %s320
      %p322 = scmp.eq.s32.totalorder %s34, 0
      %p323 = por %p321, %p322
      %s324 = ssub.s32 %s28, %s35
      %p325 = scmp.eq.s32.totalorder %s324, 0
      %s327 = sadd.s32 %s326, 1
      %s328 = scalar_select %p325, %s326, %s327
      %p331 = pneg %p325
      %p332 = scmp.eq.s32.totalorder %s28, 1
      %p333 = por %p331, %p332
      %p334 = scmp.ne.s32.totalorder %s326, %s329
      %p335 = scmp.eq.s32.totalorder %s28, 0
      %p336 = por %p334, %p335
      %p337 = scmp.ne.s32.totalorder %s326, %s329
      %p338 = scmp.eq.s32.totalorder %s33, 1
      %p339 = por %p337, %p338
      %p340 = scmp.ne.s32.totalorder %s329, %s330
      %p341 = scmp.eq.s32.totalorder %s33, 0
      %p342 = por %p340, %p341
      %p343 = scmp.ne.s32.totalorder %s329, %s330
      %p344 = scmp.eq.s32.totalorder %s34, 1
      %p345 = por %p343, %p344
      %p347 = scmp.ne.s32.totalorder %s330, %s346
      %p348 = scmp.eq.s32.totalorder %s34, 0
      %p349 = por %p347, %p348
      %s350 = ssub.s32 %s28, %s35
      %p351 = scmp.eq.s32.totalorder %s350, 0
      %s353 = sadd.s32 %s352, 1
      %s354 = scalar_select %p351, %s352, %s353
      %p357 = pneg %p351
      %p358 = scmp.eq.s32.totalorder %s28, 1
      %p359 = por %p357, %p358
      %p360 = scmp.ne.s32.totalorder %s352, %s355
      %p361 = scmp.eq.s32.totalorder %s28, 0
      %p362 = por %p360, %p361
      %p363 = scmp.ne.s32.totalorder %s352, %s355
      %p364 = scmp.eq.s32.totalorder %s33, 1
      %p365 = por %p363, %p364
      %p366 = scmp.ne.s32.totalorder %s355, %s356
      %p367 = scmp.eq.s32.totalorder %s33, 0
      %p368 = por %p366, %p367
      %p369 = scmp.ne.s32.totalorder %s355, %s356
      %p370 = scmp.eq.s32.totalorder %s34, 1
      %p371 = por %p369, %p370
      %p373 = scmp.ne.s32.totalorder %s356, %s372
      %p374 = scmp.eq.s32.totalorder %s34, 0
      %p375 = por %p373, %p374
      %p376 = scmp.le.s32.totalorder 1, %s28
      %p377 = scmp.lt.s32.totalorder %s28, 3
      %p378 = pnand %p376, %p377
      %p379 = pneg %p378
      // Predicated region
      $region9: #{tpu_custom_call.1} parent=5 // pred_check
        _
      $region10: #{tpu_custom_call.1} parent=5 // pred_check_branch
        %381 = sbr.rel (%p378) target = $region12
      $region11: #{tpu_custom_call.1} parent=5 // pred_region
        %s382 = ssub.s32 %s28, 1
        // Predicated region
        $region13: #{tpu_custom_call.1} parent=11 // pred_check
          %p383 = pneg %p127
        $region14: #{tpu_custom_call.1} parent=11 // pred_check_branch
          %385 = sbr.rel (%p383) target = $region16
        $region15: #{tpu_custom_call.1} parent=11 // pred_region
          _
        $region16: #{tpu_custom_call.1} parent=11 // pred_fallthru
          _
        // Predicated region
        $region17: #{tpu_custom_call.1} parent=11 // pred_check
          %p386 = pneg %p148
        $region18: #{tpu_custom_call.1} parent=11 // pred_check_branch
          %388 = sbr.rel (%p386) target = $region20
        $region19: #{tpu_custom_call.1} parent=11 // pred_region
          _
        $region20: #{tpu_custom_call.1} parent=11 // pred_fallthru
          _
        // Predicated region
        $region21: #{tpu_custom_call.1} parent=11 // pred_check
          %p389 = pneg %p169
        $region22: #{tpu_custom_call.1} parent=11 // pred_check_branch
          %391 = sbr.rel (%p389) target = $region24
        $region23: #{tpu_custom_call.1} parent=11 // pred_region
          _
        $region24: #{tpu_custom_call.1} parent=11 // pred_fallthru
          _
        // Predicated region
        $region25: #{tpu_custom_call.1} parent=11 // pred_check
          %p392 = pneg %p190
        $region26: #{tpu_custom_call.1} parent=11 // pred_check_branch
          %394 = sbr.rel (%p392) target = $region28
        $region27: #{tpu_custom_call.1} parent=11 // pred_region
          _
        $region28: #{tpu_custom_call.1} parent=11 // pred_fallthru
          _
        // Predicated region
        $region29: #{tpu_custom_call.1} parent=11 // pred_check
          %p395 = pneg %p211
        $region30: #{tpu_custom_call.1} parent=11 // pred_check_branch
          %397 = sbr.rel (%p395) target = $region32
        $region31: #{tpu_custom_call.1} parent=11 // pred_region
          _
        $region32: #{tpu_custom_call.1} parent=11 // pred_fallthru
          _
        // Predicated region
        $region33: #{tpu_custom_call.1} parent=11 // pred_check
          %p398 = pneg %p232
        $region34: #{tpu_custom_call.1} parent=11 // pred_check_branch
          %400 = sbr.rel (%p398) target = $region36
        $region35: #{tpu_custom_call.1} parent=11 // pred_region
          _
        $region36: #{tpu_custom_call.1} parent=11 // pred_fallthru
          _
        // Predicated region
        $region37: #{tpu_custom_call.1} parent=11 // pred_check
          %p401 = pneg %p253
        $region38: #{tpu_custom_call.1} parent=11 // pred_check_branch
          %403 = sbr.rel (%p401) target = $region40
        $region39: #{tpu_custom_call.1} parent=11 // pred_region
          %s405 = ssub.s32 512, 512
          %406 = vsyncadd [#allocation3], %s405
          %s407 = sshll.u32 [#allocation2], 4
          %s408 = int_to_ptr.vmem [resolvable:$true] %s407
          %413 = dma.hbm_to_vmem [thread:$0]  %s9, 512, %s408, [#allocation3], 128, 128, 8
        $region40: #{tpu_custom_call.1} parent=11 // pred_fallthru
          _
        // Predicated region
        $region41: #{tpu_custom_call.1} parent=11 // pred_check
          %p414 = pneg %p274
        $region42: #{tpu_custom_call.1} parent=11 // pred_check_branch
          %416 = sbr.rel (%p414) target = $region44
        $region43: #{tpu_custom_call.1} parent=11 // pred_region
          _
        $region44: #{tpu_custom_call.1} parent=11 // pred_fallthru
          _
        // Predicated region
        $region45: #{tpu_custom_call.1} parent=11 // pred_check
          %p417 = pneg %p295
        $region46: #{tpu_custom_call.1} parent=11 // pred_check_branch
          %419 = sbr.rel (%p417) target = $region48
        $region47: #{tpu_custom_call.1} parent=11 // pred_region
          _
        $region48: #{tpu_custom_call.1} parent=11 // pred_fallthru
          _
        // Predicated region
        $region49: #{tpu_custom_call.1} parent=11 // pred_check
          %p420 = pneg %p316
        $region50: #{tpu_custom_call.1} parent=11 // pred_check_branch
          %422 = sbr.rel (%p420) target = $region52
        $region51: #{tpu_custom_call.1} parent=11 // pred_region
          _
        $region52: #{tpu_custom_call.1} parent=11 // pred_fallthru
          _
      $region12: #{tpu_custom_call.1} parent=5 // pred_fallthru
        _
      %p423 = scmp.lt.s32.totalorder %s28, 2
      // Predicated region
      $region53: #{tpu_custom_call.1} parent=5 // pred_check
        %p424 = pneg %p423
      $region54: #{tpu_custom_call.1} parent=5 // pred_check_branch
        %426 = sbr.rel (%p424) target = $region56
      $region55: #{tpu_custom_call.1} parent=5 // pred_region
        // Predicated region
        $region57: #{tpu_custom_call.1} parent=55 // pred_check
          %p427 = pneg %p48
        $region58: #{tpu_custom_call.1} parent=55 // pred_check_branch
          %429 = sbr.rel (%p427) target = $region60
        $region59: #{tpu_custom_call.1} parent=55 // pred_region
          %s430 = smul.u32 8, %s28
          %p431 = scmp.lt.s32.totalorder %s430, 15
          %s432 = scalar_select %p431, %s430, 15
          %s433 = smul.addr %s432, 8
          %s434 = scalar_lea.vmem %s0, %s433
          %s435 = smul.u32 8, %s28
        $region60: #{tpu_custom_call.1} parent=55 // pred_fallthru
          _
        // Predicated region
        $region61: #{tpu_custom_call.1} parent=55 // pred_check
          %p436 = pneg %p74
        $region62: #{tpu_custom_call.1} parent=55 // pred_check_branch
          %438 = sbr.rel (%p436) target = $region64
        $region63: #{tpu_custom_call.1} parent=55 // pred_region
          %p439 = scmp.lt.s32.totalorder %s28, 1
          %s440 = scalar_select %p439, %s28, 1
          %s441 = smul.addr %s440, 8
          %s442 = scalar_lea.vmem %s1, %s441
        $region64: #{tpu_custom_call.1} parent=55 // pred_fallthru
          _
        // Predicated region
        $region65: #{tpu_custom_call.1} parent=55 // pred_check
          %p443 = pneg %p100
        $region66: #{tpu_custom_call.1} parent=55 // pred_check_branch
          %445 = sbr.rel (%p443) target = $region68
        $region67: #{tpu_custom_call.1} parent=55 // pred_region
          %p446 = scmp.lt.s32.totalorder %s28, 1
          %s447 = scalar_select %p446, %s28, 1
          %s448 = smul.addr %s447, 8
          %s449 = scalar_lea.vmem %s2, %s448
        $region68: #{tpu_custom_call.1} parent=55 // pred_fallthru
          _
      $region56: #{tpu_custom_call.1} parent=5 // pred_fallthru
        _
      %p450 = scmp.le.s32.totalorder 1, %s28
      %p451 = scmp.lt.s32.totalorder %s28, 3
      %p452 = pnand %p450, %p451
      %p453 = pneg %p452
      // Predicated region
      $region69: #{tpu_custom_call.1} parent=5 // pred_check
        _
      $region70: #{tpu_custom_call.1} parent=5 // pred_check_branch
        %455 = sbr.rel (%p452) target = $region72
      $region71: #{tpu_custom_call.1} parent=5 // pred_region
        %s456 = ssub.s32 %s28, 1
        // Predicated region
        $region73: #{tpu_custom_call.1} parent=71 // pred_check
          %p457 = pneg %p253
        $region74: #{tpu_custom_call.1} parent=71 // pred_check_branch
          %459 = sbr.rel (%p457) target = $region76
        $region75: #{tpu_custom_call.1} parent=71 // pred_region
          %460 = dma.done [#allocation3], 512
        $region76: #{tpu_custom_call.1} parent=71 // pred_fallthru
          _
        %s461 = smul.u32 8, %s33
        %p462 = scmp.lt.s32.totalorder %s461, 15
        %s463 = scalar_select %p462, %s461, 15
        %s464 = smul.addr %s463, 8
        %s465 = scalar_lea.vmem %s0, %s464
        %p466 = pneg %p54
        %p467 = pneg %p51
        %p468 = scmp.lt.s32.totalorder %s33, 1
        %s469 = scalar_select %p468, %s33, 1
        %s470 = smul.addr %s469, 8
        %s471 = scalar_lea.vmem %s1, %s470
        %p472 = pneg %p80
        %p473 = pneg %p77
        %p474 = scmp.lt.s32.totalorder %s33, 1
        %s475 = scalar_select %p474, %s33, 1
        %s476 = smul.addr %s475, 8
        %s477 = scalar_lea.vmem %s2, %s476
        %p478 = pneg %p106
        %p479 = pneg %p103
        %p480 = pneg %p127
        %p481 = pneg %p124
        %p482 = pneg %p148
        %p483 = pneg %p145
        %p484 = pneg %p169
        %p485 = pneg %p166
        %p486 = pneg %p190
        %p487 = pneg %p187
        %p488 = pneg %p211
        %p489 = pneg %p208
        %p490 = pneg %p232
        %p491 = pneg %p229
        %p492 = pneg %p253
        %p493 = pneg %p250
        %p494 = pneg %p274
        %p495 = pneg %p271
        %p496 = pneg %p295
        %p497 = pneg %p292
        %p498 = pneg %p316
        %p499 = pneg %p313
        %p500 = pneg %p342
        %p501 = pneg %p339
        %s502 = sand.u32 %s329, 1
        %s503 = scalar_lea.sflag [#allocation4], %s502
        %s504 = sand.u32 %s329, 1
        %s505 = smul.addr %s504, 8
        %s506 = scalar_lea.vmem [#allocation5], %s505
        %p507 = pneg %p368
        %p508 = pneg %p365
        %s509 = sand.u32 %s355, 1
        %s510 = scalar_lea.sflag [#allocation7], %s509
        %s511 = sand.u32 %s355, 1
        %s512 = smul.addr %s511, 8
        %s513 = scalar_lea.vmem [#allocation6], %s512
        %s514 = smul.u32 8, %s33
        %p515 = scmp.lt.s32.totalorder %s514, 15
        %s516 = scalar_select %p515, %s514, 15
        %s517 = smul.addr %s516, 8
        %s518 = scalar_lea.vmem %s0, %s517
        %s519 = smul.u32 8, %s33
        %p520 = scmp.lt.s32.totalorder %s33, 1
        %s521 = scalar_select %p520, %s33, 1
        %s522 = smul.addr %s521, 8
        %s523 = scalar_lea.vmem %s1, %s522
        %p524 = scmp.lt.s32.totalorder %s33, 1
        %s525 = scalar_select %p524, %s33, 1
        %s526 = smul.addr %s525, 8
        %s527 = scalar_lea.vmem %s2, %s526
        %v528 = vld [vmem:[%s518] sm:$0xff]
        %v529 = vld [vmem:[%s518 + $0x8] sm:$0xff]
        %v530 = vld [vmem:[%s518 + $0x10] sm:$0xff]
        %v531 = vld [vmem:[%s518 + $0x18] sm:$0xff]
        %v532 = vld [vmem:[%s518 + $0x20] sm:$0xff]
        %v533 = vld [vmem:[%s518 + $0x28] sm:$0xff]
        %v534 = vld [vmem:[%s518 + $0x30] sm:$0xff]
        %v535 = vld [vmem:[%s518 + $0x38] sm:$0xff]
        %v536 = vld [vmem:[%s3] sm:$0x1]
        %v538 = vlaneseq
        %v539 = vshrl.u32 %v538, 7
        %v540 = vsub.s32 0, %v539
        %v541 = vrot.slane %v536, %v540
        %v543 = vmul.f32 %v528, %v541
        %v544 = vmul.f32 %v529, %v541
        %v545 = vmul.f32 %v530, %v541
        %v546 = vmul.f32 %v531, %v541
        %v547 = vmul.f32 %v532, %v541
        %v548 = vmul.f32 %v533, %v541
        %v549 = vmul.f32 %v534, %v541
        %v550 = vmul.f32 %v535, %v541
        %vm551 = vcmask 261120
        %v552 = vsel %vm551, %v543, 0.0
        %553 = vadd.xlane.f32.xlu0 %v552
        %v554 = vpop.xlane.xlu0 %553
        %v555 = vsel %vm551, %v544, 0.0
        %556 = vadd.xlane.f32.xlu0 %v555
        %v557 = vpop.xlane.xlu0 %556
        %v558 = vsel %vm551, %v545, 0.0
        %559 = vadd.xlane.f32.xlu0 %v558
        %v560 = vpop.xlane.xlu0 %559
        %v561 = vsel %vm551, %v546, 0.0
        %562 = vadd.xlane.f32.xlu0 %v561
        %v563 = vpop.xlane.xlu0 %562
        %v564 = vsel %vm551, %v547, 0.0
        %565 = vadd.xlane.f32.xlu0 %v564
        %v566 = vpop.xlane.xlu0 %565
        %v567 = vsel %vm551, %v548, 0.0
        %568 = vadd.xlane.f32.xlu0 %v567
        %v569 = vpop.xlane.xlu0 %568
        %v570 = vsel %vm551, %v549, 0.0
        %571 = vadd.xlane.f32.xlu0 %v570
        %v572 = vpop.xlane.xlu0 %571
        %v573 = vsel %vm551, %v550, 0.0
        %574 = vadd.xlane.f32.xlu0 %v573
        %v575 = vpop.xlane.xlu0 %574
        %v576 = vlaneseq
        %v577 = vand.u32 %v576, 127
        %v578 = vld [vmem:[%s527] sm:$0xff]
        %579 = vset.pattern.permute.xlu0 0
        %580 = vperm.xlu0 %579, %v578
        %v581 = vpop.permute.xlu0 %580
        %vm582 = vcmp.lt.s32.totalorder %v577, %v581
        %v591 = vlaneseq
        %v592 = vshrl.u32 %v591, 7
        %v593 = vsub.s32 %v577, %v592
        %v594 = vrot.slane %v554, %v593
        %v595 = vlaneseq
        %v596 = vshrl.u32 %v595, 7
        %v597 = vsub.s32 %v577, %v596
        %v598 = vrot.slane %v557, %v597
        %v599 = vlaneseq
        %v600 = vshrl.u32 %v599, 7
        %v601 = vsub.s32 %v577, %v600
        %v602 = vrot.slane %v560, %v601
        %v603 = vlaneseq
        %v604 = vshrl.u32 %v603, 7
        %v605 = vsub.s32 %v577, %v604
        %v606 = vrot.slane %v563, %v605
        %v607 = vlaneseq
        %v608 = vshrl.u32 %v607, 7
        %v609 = vsub.s32 %v577, %v608
        %v610 = vrot.slane %v566, %v609
        %v611 = vlaneseq
        %v612 = vshrl.u32 %v611, 7
        %v613 = vsub.s32 %v577, %v612
        %v614 = vrot.slane %v569, %v613
        %v615 = vlaneseq
        %v616 = vshrl.u32 %v615, 7
        %v617 = vsub.s32 %v577, %v616
        %v618 = vrot.slane %v572, %v617
        %v619 = vlaneseq
        %v620 = vshrl.u32 %v619, 7
        %v621 = vsub.s32 %v577, %v620
        %v622 = vrot.slane %v575, %v621
        %vm623 = vcmask 1041409
        %v624 = vsel %vm623, %v598, %v594
        %vm625 = vcmask 1042434
        %v626 = vsel %vm625, %v602, %v624
        %vm627 = vcmask 1043459
        %v628 = vsel %vm627, %v606, %v626
        %vm629 = vcmask 1044484
        %v630 = vsel %vm629, %v610, %v628
        %vm631 = vcmask 1045509
        %v632 = vsel %vm631, %v614, %v630
        %vm633 = vcmask 1046534
        %v634 = vsel %vm633, %v618, %v632
        %vm635 = vcmask 1047559
        %v636 = vsel %vm635, %v622, %v634
        %v638 = vsel %vm582, %v636, -1e+09
        %vm639 = vcmask 64512
        %v640 = vsel %vm639, %v638, -inf
        %641 = vmax.xlane.f32.xlu0 %v640
        %v642 = vpop.xlane.xlu0 %641
        %v643 = vsub.f32 %v638, %v642
        %v644 = vmul.f32 %v643, 1.442695
        %v645 = vpow.pop %v644
        %v646 = vsel %vm639, %v645, 0.0
        %647 = vadd.xlane.f32.xlu0 %v646
        %v648 = vpop.xlane.xlu0 %647
        %v649 = vrcp.pop %v648
        %v650 = vmul.f32 %v645, %v649
        %v651 = vsel %vm639, %v650, 0.0
        %652 = vst [vmem:[%s513] sm:$0xff] %v651
        %v653 = vlaneseq
        %v654 = vshrl.u32 %v653, 7
        %v655 = vsub.s32 0, %v654
        %v656 = vrot.slane %v650, %v655
        %658 = vbcast.lane.b32.xlu0 %v656, 256
        %v659 = vpop.permute.xlu0 %658
        %v660 = vlaneseq
        %v661 = vshrl.u32 %v660, 7
        %v662 = vsub.s32 1, %v661
        %v663 = vrot.slane %v650, %v662
        %665 = vbcast.lane.b32.xlu0 %v663, 256
        %v666 = vpop.permute.xlu0 %665
        %v667 = vlaneseq
        %v668 = vshrl.u32 %v667, 7
        %v669 = vsub.s32 2, %v668
        %v670 = vrot.slane %v650, %v669
        %672 = vbcast.lane.b32.xlu0 %v670, 256
        %v673 = vpop.permute.xlu0 %672
        %v674 = vlaneseq
        %v675 = vshrl.u32 %v674, 7
        %v676 = vsub.s32 3, %v675
        %v677 = vrot.slane %v650, %v676
        %679 = vbcast.lane.b32.xlu0 %v677, 256
        %v680 = vpop.permute.xlu0 %679
        %v681 = vlaneseq
        %v682 = vshrl.u32 %v681, 7
        %v683 = vsub.s32 4, %v682
        %v684 = vrot.slane %v650, %v683
        %686 = vbcast.lane.b32.xlu0 %v684, 256
        %v687 = vpop.permute.xlu0 %686
        %v688 = vlaneseq
        %v689 = vshrl.u32 %v688, 7
        %v690 = vsub.s32 5, %v689
        %v691 = vrot.slane %v650, %v690
        %693 = vbcast.lane.b32.xlu0 %v691, 256
        %v694 = vpop.permute.xlu0 %693
        %v695 = vlaneseq
        %v696 = vshrl.u32 %v695, 7
        %v697 = vsub.s32 6, %v696
        %v698 = vrot.slane %v650, %v697
        %700 = vbcast.lane.b32.xlu0 %v698, 256
        %v701 = vpop.permute.xlu0 %700
        %v702 = vlaneseq
        %v703 = vshrl.u32 %v702, 7
        %v704 = vsub.s32 7, %v703
        %v705 = vrot.slane %v650, %v704
        %707 = vbcast.lane.b32.xlu0 %v705, 256
        %v708 = vpop.permute.xlu0 %707
        %v709 = vmul.f32 %v528, %v659
        %v710 = vmul.f32 %v529, %v666
        %v711 = vmul.f32 %v530, %v673
        %v712 = vmul.f32 %v531, %v680
        %v713 = vmul.f32 %v532, %v687
        %v714 = vmul.f32 %v533, %v694
        %v715 = vmul.f32 %v534, %v701
        %v716 = vmul.f32 %v535, %v708
        %v717 = vsel %vm551, %v709, 0.0
        %v718 = vrot.slane %v717, 4
        %v719 = vadd.f32 %v717, %v718
        %v720 = vrot.slane %v719, 2
        %v721 = vadd.f32 %v719, %v720
        %v722 = vrot.slane %v721, 1
        %v723 = vadd.f32 %v721, %v722
        %v724 = vsel %vm551, %v710, 0.0
        %v725 = vrot.slane %v724, 4
        %v726 = vadd.f32 %v724, %v725
        %v727 = vrot.slane %v726, 2
        %v728 = vadd.f32 %v726, %v727
        %v729 = vrot.slane %v728, 1
        %v730 = vadd.f32 %v728, %v729
        %v731 = vsel %vm551, %v711, 0.0
        %v732 = vrot.slane %v731, 4
        %v733 = vadd.f32 %v731, %v732
        %v734 = vrot.slane %v733, 2
        %v735 = vadd.f32 %v733, %v734
        %v736 = vrot.slane %v735, 1
        %v737 = vadd.f32 %v735, %v736
        %v738 = vsel %vm551, %v712, 0.0
        %v739 = vrot.slane %v738, 4
        %v740 = vadd.f32 %v738, %v739
        %v741 = vrot.slane %v740, 2
        %v742 = vadd.f32 %v740, %v741
        %v743 = vrot.slane %v742, 1
        %v744 = vadd.f32 %v742, %v743
        %v745 = vsel %vm551, %v713, 0.0
        %v746 = vrot.slane %v745, 4
        %v747 = vadd.f32 %v745, %v746
        %v748 = vrot.slane %v747, 2
        %v749 = vadd.f32 %v747, %v748
        %v750 = vrot.slane %v749, 1
        %v751 = vadd.f32 %v749, %v750
        %v752 = vsel %vm551, %v714, 0.0
        %v753 = vrot.slane %v752, 4
        %v754 = vadd.f32 %v752, %v753
        %v755 = vrot.slane %v754, 2
        %v756 = vadd.f32 %v754, %v755
        %v757 = vrot.slane %v756, 1
        %v758 = vadd.f32 %v756, %v757
        %v759 = vsel %vm551, %v715, 0.0
        %v760 = vrot.slane %v759, 4
        %v761 = vadd.f32 %v759, %v760
        %v762 = vrot.slane %v761, 2
        %v763 = vadd.f32 %v761, %v762
        %v764 = vrot.slane %v763, 1
        %v765 = vadd.f32 %v763, %v764
        %v766 = vsel %vm551, %v716, 0.0
        %v767 = vrot.slane %v766, 4
        %v768 = vadd.f32 %v766, %v767
        %v769 = vrot.slane %v768, 2
        %v770 = vadd.f32 %v768, %v769
        %v771 = vrot.slane %v770, 1
        %v772 = vadd.f32 %v770, %v771
        %v773 = vld [vmem:[%s523] sm:$0xff]
        %774 = vadd.xlane.f32.xlu0 %v773
        %v775 = vpop.xlane.xlu0 %774
        %v784 = vsel %vm623, %v730, %v723
        %v785 = vsel %vm625, %v737, %v784
        %v786 = vsel %vm627, %v744, %v785
        %v787 = vsel %vm629, %v751, %v786
        %v788 = vsel %vm631, %v758, %v787
        %v789 = vsel %vm633, %v765, %v788
        %v790 = vsel %vm635, %v772, %v789
        %v792 = vsel %vm551, %v790, 0.0
        %793 = vadd.xlane.f32.xlu0 %v792
        %v794 = vpop.xlane.xlu0 %793
        %v795 = vadd.f32 %v775, %v794
        %v796 = vmul.f32 %v795, 0.00625
        %v797 = vsub.f32 %v773, %v796
        %v798 = vmul.f32 %v797, %v797
        %799 = vadd.xlane.f32.xlu0 %v798
        %v800 = vpop.xlane.xlu0 %799
        %v802 = vrot.slane %v796, 1
        %v803 = vrot.slane %v796, 2
        %v804 = vrot.slane %v796, 3
        %v805 = vrot.slane %v796, 4
        %v806 = vrot.slane %v796, 5
        %v807 = vrot.slane %v796, 6
        %v808 = vrot.slane %v796, 7
        %v817 = vsub.f32 %v723, %v796
        %v818 = vsub.f32 %v730, %v802
        %v819 = vsub.f32 %v737, %v803
        %v820 = vsub.f32 %v744, %v804
        %v821 = vsub.f32 %v751, %v805
        %v822 = vsub.f32 %v758, %v806
        %v823 = vsub.f32 %v765, %v807
        %v824 = vsub.f32 %v772, %v808
        %v825 = vmul.f32 %v817, %v817
        %v826 = vmul.f32 %v818, %v818
        %v827 = vmul.f32 %v819, %v819
        %v828 = vmul.f32 %v820, %v820
        %v829 = vmul.f32 %v821, %v821
        %v830 = vmul.f32 %v822, %v822
        %v831 = vmul.f32 %v823, %v823
        %v832 = vmul.f32 %v824, %v824
        %v841 = vrot.slane %v826, 7
        %v842 = vsel %vm623, %v841, %v825
        %v843 = vrot.slane %v827, 6
        %v844 = vsel %vm625, %v843, %v842
        %v845 = vrot.slane %v828, 5
        %v846 = vsel %vm627, %v845, %v844
        %v847 = vrot.slane %v829, 4
        %v848 = vsel %vm629, %v847, %v846
        %v849 = vrot.slane %v830, 3
        %v850 = vsel %vm631, %v849, %v848
        %v851 = vrot.slane %v831, 2
        %v852 = vsel %vm633, %v851, %v850
        %v853 = vrot.slane %v832, 1
        %v854 = vsel %vm635, %v853, %v852
        %v856 = vsel %vm551, %v854, 0.0
        %857 = vadd.xlane.f32.xlu0 %v856
        %v858 = vpop.xlane.xlu0 %857
        %v859 = vadd.f32 %v800, %v858
        %v860 = vmul.f32 %v859, 0.00625
        %v861 = vadd.f32 %v860, 1e-05
        %v862 = vrsqrt.pop %v861
        %v863 = vmul.f32 %v797, %v862
        %v864 = vld [vmem:[%s4] sm:$0x1]
        %v866 = vlaneseq
        %v867 = vshrl.u32 %v866, 7
        %v868 = vsub.s32 0, %v867
        %v869 = vrot.slane %v864, %v868
        %v871 = vmul.f32 %v863, %v869
        %v872 = vld [vmem:[%s5] sm:$0x1]
        %v874 = vlaneseq
        %v875 = vshrl.u32 %v874, 7
        %v876 = vsub.s32 0, %v875
        %v877 = vrot.slane %v872, %v876
        %v879 = vadd.f32 %v871, %v877
        %v881 = vrot.slane %v862, 1
        %v882 = vrot.slane %v862, 2
        %v883 = vrot.slane %v862, 3
        %v884 = vrot.slane %v862, 4
        %v885 = vrot.slane %v862, 5
        %v886 = vrot.slane %v862, 6
        %v887 = vrot.slane %v862, 7
        %v896 = vmul.f32 %v817, %v862
        %v897 = vmul.f32 %v818, %v881
        %v898 = vmul.f32 %v819, %v882
        %v899 = vmul.f32 %v820, %v883
        %v900 = vmul.f32 %v821, %v884
        %v901 = vmul.f32 %v822, %v885
        %v902 = vmul.f32 %v823, %v886
        %v903 = vmul.f32 %v824, %v887
        %v904 = vld [vmem:[%s6] sm:$0x1]
        %v906 = vlaneseq
        %v907 = vshrl.u32 %v906, 7
        %v908 = vsub.s32 0, %v907
        %v909 = vrot.slane %v904, %v908
        %v911 = vmul.f32 %v896, %v909
        %v912 = vmul.f32 %v897, %v909
        %v913 = vmul.f32 %v898, %v909
        %v914 = vmul.f32 %v899, %v909
        %v915 = vmul.f32 %v900, %v909
        %v916 = vmul.f32 %v901, %v909
        %v917 = vmul.f32 %v902, %v909
        %v918 = vmul.f32 %v903, %v909
        %v919 = vld [vmem:[%s7] sm:$0x1]
        %v921 = vlaneseq
        %v922 = vshrl.u32 %v921, 7
        %v923 = vsub.s32 0, %v922
        %v924 = vrot.slane %v919, %v923
        %v926 = vadd.f32 %v911, %v924
        %v927 = vadd.f32 %v912, %v924
        %v928 = vadd.f32 %v913, %v924
        %v929 = vadd.f32 %v914, %v924
        %v930 = vadd.f32 %v915, %v924
        %v931 = vadd.f32 %v916, %v924
        %v932 = vadd.f32 %v917, %v924
        %v933 = vadd.f32 %v918, %v924
        %v934 = vld [vmem:[%s8] sm:$0xff]
        %v935 = vld [vmem:[%s8 + $0x8] sm:$0xff]
        %v936 = vld [vmem:[%s8 + $0x10] sm:$0xff]
        %v937 = vld [vmem:[%s8 + $0x18] sm:$0xff]
        %v938 = vld [vmem:[%s8 + $0x20] sm:$0xff]
        %v939 = vld [vmem:[%s8 + $0x28] sm:$0xff]
        %v940 = vld [vmem:[%s8 + $0x30] sm:$0xff]
        %v941 = vld [vmem:[%s8 + $0x38] sm:$0xff]
        %v942 = vld [vmem:[%s8 + $0x40] sm:$0xff]
        %v943 = vld [vmem:[%s8 + $0x48] sm:$0xff]
        %v944 = vld [vmem:[%s8 + $0x50] sm:$0xff]
        %v945 = vld [vmem:[%s8 + $0x58] sm:$0xff]
        %v946 = vld [vmem:[%s8 + $0x60] sm:$0xff]
        %v947 = vld [vmem:[%s8 + $0x68] sm:$0xff]
        %v948 = vld [vmem:[%s8 + $0x70] sm:$0xff]
        %v949 = vld [vmem:[%s8 + $0x78] sm:$0xff]
        %v950 = vld [vmem:[#allocation2] sm:$0xff]
        %v951 = vld [vmem:[#allocation2 + $0x8] sm:$0xff]
        %v952 = vld [vmem:[#allocation2 + $0x10] sm:$0xff]
        %v953 = vld [vmem:[#allocation2 + $0x18] sm:$0xff]
        %v962 = vrot.slane %v927, 7
        %v963 = vsel %vm623, %v962, %v926
        %v964 = vrot.slane %v928, 6
        %v965 = vsel %vm625, %v964, %v963
        %v966 = vrot.slane %v929, 5
        %v967 = vsel %vm627, %v966, %v965
        %v968 = vrot.slane %v930, 4
        %v969 = vsel %vm629, %v968, %v967
        %v970 = vrot.slane %v931, 3
        %v971 = vsel %vm631, %v970, %v969
        %v972 = vrot.slane %v932, 2
        %v973 = vsel %vm633, %v972, %v971
        %v974 = vrot.slane %v933, 1
        %v975 = vsel %vm635, %v974, %v973
        %v976 = vsel %vm551, %v975, 0
        %978 = vmatprep.subr.mxu0 0.0
        %979 = vmatpush1.msra.mxu0 0.0
        %980 = vmatprep.subr.mxu0 0.0
        %981 = vmatpush1.msra.mxu0 0.0
        %982 = vmatprep.subr.mxu0 0.0
        %983 = vmatpush1.msra.mxu0 0.0
        %984 = vmatprep.subr.mxu0 0.0
        %985 = vmatpush1.msra.mxu0 0.0
        %986 = vmatprep.subr.mxu0 0.0
        %987 = vmatpush1.msra.mxu0 0.0
        %988 = vmatprep.subr.mxu0 0.0
        %989 = vmatpush1.msra.mxu0 0.0
        %990 = vmatprep.subr.mxu0 0.0
        %991 = vmatpush1.msra.mxu0 0.0
        %992 = vmatprep.subr.mxu0 0.0
        %993 = vmatpush1.msra.mxu0 0.0
        %994 = vmatprep.subr.mxu0 0.0
        %995 = vmatpush1.msra.mxu0 0.0
        %996 = vmatprep.subr.mxu0 0.0
        %997 = vmatpush1.msra.mxu0 0.0
        %998 = vmatprep.subr.mxu0 0.0
        %999 = vmatpush1.msra.mxu0 0.0
        %1000 = vmatprep.subr.mxu0 0.0
        %1001 = vmatpush1.msra.mxu0 0.0
        %1002 = vmatprep.subr.mxu0 0.0
        %1003 = vmatpush1.msra.mxu0 %v953
        %1004 = vmatprep.subr.mxu0 0.0
        %1005 = vmatpush1.msra.mxu0 %v952
        %1006 = vmatprep.subr.mxu0 0.0
        %1007 = vmatpush1.msra.mxu0 %v951
        %1008 = vmatprep.subr.mxu0 0.0
        %1009 = vmatpush1.msra.mxu0 %v950
        %1010 = vmatprep.subr.mxu0 0.0
        %1011 = vmatpush2.msra.mxu0 0.0
        %1012 = vmatprep.subr.mxu0 0.0
        %1013 = vmatpush2.msra.mxu0 0.0
        %1014 = vmatprep.subr.mxu0 0.0
        %1015 = vmatpush2.msra.mxu0 0.0
        %1016 = vmatprep.subr.mxu0 0.0
        %1017 = vmatpush2.msra.mxu0 0.0
        %1018 = vmatprep.subr.mxu0 0.0
        %1019 = vmatpush2.msra.mxu0 0.0
        %1020 = vmatprep.subr.mxu0 0.0
        %1021 = vmatpush2.msra.mxu0 0.0
        %1022 = vmatprep.subr.mxu0 0.0
        %1023 = vmatpush2.msra.mxu0 0.0
        %1024 = vmatprep.subr.mxu0 0.0
        %1025 = vmatpush2.msra.mxu0 0.0
        %1026 = vmatprep.subr.mxu0 0.0
        %1027 = vmatpush2.msra.mxu0 0.0
        %1028 = vmatprep.subr.mxu0 0.0
        %1029 = vmatpush2.msra.mxu0 0.0
        %1030 = vmatprep.subr.mxu0 0.0
        %1031 = vmatpush2.msra.mxu0 0.0
        %1032 = vmatprep.subr.mxu0 0.0
        %1033 = vmatpush2.msra.mxu0 0.0
        %1034 = vmatprep.subr.mxu0 0.0
        %1035 = vmatpush2.msra.mxu0 0.0
        %1036 = vmatprep.subr.mxu0 0.0
        %1037 = vmatpush2.msra.mxu0 0.0
        %1038 = vmatprep.subr.mxu0 0.0
        %1039 = vmatpush2.msra.mxu0 0.0
        %1040 = vmatprep.subr.mxu0 0.0
        %1041 = vmatpush2.msra.mxu0 0.0
        %1042 = vmatprep.mubr.f32.mxu0 0.0
        %1043 = vmatmul.mubr.f32.gmra.mxu0 %v976
        %v1044 = vpop.f32.mrf.mxu0
        %v1045 = vadd.f32 0.0, %v1044
        %v1046 = vpop.f32.mrf.mxu0
        %1047 = vdwg.mxu0
        %1048 = vmatprep.subr.mxu0 0.0
        %1049 = vmatpush1.msra.mxu0 %v949
        %1050 = vmatprep.subr.mxu0 0.0
        %1051 = vmatpush1.msra.mxu0 %v948
        %1052 = vmatprep.subr.mxu0 0.0
        %1053 = vmatpush1.msra.mxu0 %v947
        %1054 = vmatprep.subr.mxu0 0.0
        %1055 = vmatpush1.msra.mxu0 %v946
        %1056 = vmatprep.subr.mxu0 0.0
        %1057 = vmatpush1.msra.mxu0 %v945
        %1058 = vmatprep.subr.mxu0 0.0
        %1059 = vmatpush1.msra.mxu0 %v944
        %1060 = vmatprep.subr.mxu0 0.0
        %1061 = vmatpush1.msra.mxu0 %v943
        %1062 = vmatprep.subr.mxu0 0.0
        %1063 = vmatpush1.msra.mxu0 %v942
        %1064 = vmatprep.subr.mxu0 0.0
        %1065 = vmatpush1.msra.mxu0 %v941
        %1066 = vmatprep.subr.mxu0 0.0
        %1067 = vmatpush1.msra.mxu0 %v940
        %1068 = vmatprep.subr.mxu0 0.0
        %1069 = vmatpush1.msra.mxu0 %v939
        %1070 = vmatprep.subr.mxu0 0.0
        %1071 = vmatpush1.msra.mxu0 %v938
        %1072 = vmatprep.subr.mxu0 0.0
        %1073 = vmatpush1.msra.mxu0 %v937
        %1074 = vmatprep.subr.mxu0 0.0
        %1075 = vmatpush1.msra.mxu0 %v936
        %1076 = vmatprep.subr.mxu0 0.0
        %1077 = vmatpush1.msra.mxu0 %v935
        %1078 = vmatprep.subr.mxu0 0.0
        %1079 = vmatpush1.msra.mxu0 %v934
        %1080 = vmatprep.subr.mxu0 0.0
        %1081 = vmatpush2.msra.mxu0 0.0
        %1082 = vmatprep.subr.mxu0 0.0
        %1083 = vmatpush2.msra.mxu0 0.0
        %1084 = vmatprep.subr.mxu0 0.0
        %1085 = vmatpush2.msra.mxu0 0.0
        %1086 = vmatprep.subr.mxu0 0.0
        %1087 = vmatpush2.msra.mxu0 0.0
        %1088 = vmatprep.subr.mxu0 0.0
        %1089 = vmatpush2.msra.mxu0 0.0
        %1090 = vmatprep.subr.mxu0 0.0
        %1091 = vmatpush2.msra.mxu0 0.0
        %1092 = vmatprep.subr.mxu0 0.0
        %1093 = vmatpush2.msra.mxu0 0.0
        %1094 = vmatprep.subr.mxu0 0.0
        %1095 = vmatpush2.msra.mxu0 0.0
        %1096 = vmatprep.subr.mxu0 0.0
        %1097 = vmatpush2.msra.mxu0 0.0
        %1098 = vmatprep.subr.mxu0 0.0
        %1099 = vmatpush2.msra.mxu0 0.0
        %1100 = vmatprep.subr.mxu0 0.0
        %1101 = vmatpush2.msra.mxu0 0.0
        %1102 = vmatprep.subr.mxu0 0.0
        %1103 = vmatpush2.msra.mxu0 0.0
        %1104 = vmatprep.subr.mxu0 0.0
        %1105 = vmatpush2.msra.mxu0 0.0
        %1106 = vmatprep.subr.mxu0 0.0
        %1107 = vmatpush2.msra.mxu0 0.0
        %1108 = vmatprep.subr.mxu0 0.0
        %1109 = vmatpush2.msra.mxu0 0.0
        %1110 = vmatprep.subr.mxu0 0.0
        %1111 = vmatpush2.msra.mxu0 0.0
        %1112 = vmatprep.mubr.f32.mxu0 0.0
        %1113 = vmatmul.mubr.f32.gmra.mxu0 %v879
        %v1114 = vpop.f32.mrf.mxu0
        %v1115 = vadd.f32 %v1045, %v1114
        %v1116 = vpop.f32.mrf.mxu0
        %1117 = vdwg.mxu0
        %v1118 = vld [vmem:[%s10] sm:$0x1]
        %v1120 = vlaneseq
        %v1121 = vshrl.u32 %v1120, 7
        %v1122 = vsub.s32 0, %v1121
        %v1123 = vrot.slane %v1118, %v1122
        %v1125 = vadd.f32 %v1115, %v1123
        %v1126 = vmax.f32 %v1125, 0.0
        %v1127 = vld [vmem:[%s11] sm:$0xff]
        %v1128 = vld [vmem:[%s11 + $0x8] sm:$0xff]
        %v1129 = vld [vmem:[%s11 + $0x10] sm:$0xff]
        %v1130 = vld [vmem:[%s11 + $0x18] sm:$0xff]
        %v1131 = vld [vmem:[%s11 + $0x20] sm:$0xff]
        %v1132 = vld [vmem:[%s11 + $0x28] sm:$0xff]
        %v1133 = vld [vmem:[%s11 + $0x30] sm:$0xff]
        %v1134 = vld [vmem:[%s11 + $0x38] sm:$0xff]
        %v1135 = vld [vmem:[%s12] sm:$0x1]
        %v1137 = vlaneseq
        %v1138 = vshrl.u32 %v1137, 7
        %v1139 = vsub.s32 0, %v1138
        %v1140 = vrot.slane %v1135, %v1139
        %vm1142 = vcmask 523264
        %v1144 = vsel %vm1142, %v1126, 0
        %1146 = vmatprep.subr.mxu0 0.0
        %1147 = vmatpush1.msra.mxu0 0.0
        %1148 = vmatprep.subr.mxu0 0.0
        %1149 = vmatpush1.msra.mxu0 0.0
        %1150 = vmatprep.subr.mxu0 0.0
        %1151 = vmatpush1.msra.mxu0 0.0
        %1152 = vmatprep.subr.mxu0 0.0
        %1153 = vmatpush1.msra.mxu0 0.0
        %1154 = vmatprep.subr.mxu0 0.0
        %1155 = vmatpush1.msra.mxu0 0.0
        %1156 = vmatprep.subr.mxu0 0.0
        %1157 = vmatpush1.msra.mxu0 0.0
        %1158 = vmatprep.subr.mxu0 0.0
        %1159 = vmatpush1.msra.mxu0 0.0
        %1160 = vmatprep.subr.mxu0 0.0
        %1161 = vmatpush1.msra.mxu0 0.0
        %1162 = vmatprep.subr.mxu0 0.0
        %1163 = vmatpush1.msra.mxu0 %v1134
        %1164 = vmatprep.subr.mxu0 0.0
        %1165 = vmatpush1.msra.mxu0 %v1133
        %1166 = vmatprep.subr.mxu0 0.0
        %1167 = vmatpush1.msra.mxu0 %v1132
        %1168 = vmatprep.subr.mxu0 0.0
        %1169 = vmatpush1.msra.mxu0 %v1131
        %1170 = vmatprep.subr.mxu0 0.0
        %1171 = vmatpush1.msra.mxu0 %v1130
        %1172 = vmatprep.subr.mxu0 0.0
        %1173 = vmatpush1.msra.mxu0 %v1129
        %1174 = vmatprep.subr.mxu0 0.0
        %1175 = vmatpush1.msra.mxu0 %v1128
        %1176 = vmatprep.subr.mxu0 0.0
        %1177 = vmatpush1.msra.mxu0 %v1127
        %1178 = vmatprep.subr.mxu0 0.0
        %1179 = vmatpush2.msra.mxu0 0.0
        %1180 = vmatprep.subr.mxu0 0.0
        %1181 = vmatpush2.msra.mxu0 0.0
        %1182 = vmatprep.subr.mxu0 0.0
        %1183 = vmatpush2.msra.mxu0 0.0
        %1184 = vmatprep.subr.mxu0 0.0
        %1185 = vmatpush2.msra.mxu0 0.0
        %1186 = vmatprep.subr.mxu0 0.0
        %1187 = vmatpush2.msra.mxu0 0.0
        %1188 = vmatprep.subr.mxu0 0.0
        %1189 = vmatpush2.msra.mxu0 0.0
        %1190 = vmatprep.subr.mxu0 0.0
        %1191 = vmatpush2.msra.mxu0 0.0
        %1192 = vmatprep.subr.mxu0 0.0
        %1193 = vmatpush2.msra.mxu0 0.0
        %1194 = vmatprep.subr.mxu0 0.0
        %1195 = vmatpush2.msra.mxu0 0.0
        %1196 = vmatprep.subr.mxu0 0.0
        %1197 = vmatpush2.msra.mxu0 0.0
        %1198 = vmatprep.subr.mxu0 0.0
        %1199 = vmatpush2.msra.mxu0 0.0
        %1200 = vmatprep.subr.mxu0 0.0
        %1201 = vmatpush2.msra.mxu0 0.0
        %1202 = vmatprep.subr.mxu0 0.0
        %1203 = vmatpush2.msra.mxu0 0.0
        %1204 = vmatprep.subr.mxu0 0.0
        %1205 = vmatpush2.msra.mxu0 0.0
        %1206 = vmatprep.subr.mxu0 0.0
        %1207 = vmatpush2.msra.mxu0 0.0
        %1208 = vmatprep.subr.mxu0 0.0
        %1209 = vmatpush2.msra.mxu0 0.0
        %1210 = vmatprep.mubr.f32.mxu0 0.0
        %1211 = vmatmul.mubr.f32.gmra.mxu0 %v1144
        %v1212 = vpop.f32.mrf.mxu0
        %v1213 = vadd.f32 %v1140, %v1212
        %v1214 = vpop.f32.mrf.mxu0
        %1215 = vdwg.mxu0
        %1216 = vst [vmem:[%s506] sm:$0xff] %v1213
        %s1217 = sand.u32 %s329, 1
        %s1218 = scalar_lea.sflag [#allocation4], %s1217
        %s1219 = sand.u32 %s329, 1
        %s1220 = smul.addr %s1219, 8
        %s1221 = scalar_lea.vmem [#allocation5], %s1220
        %s1222 = sand.u32 %s355, 1
        %s1223 = scalar_lea.sflag [#allocation7], %s1222
        %s1224 = sand.u32 %s355, 1
        %s1225 = smul.addr %s1224, 8
        %s1226 = scalar_lea.vmem [#allocation6], %s1225
        // Predicated region
        $region77: #{tpu_custom_call.1} parent=71 // pred_check
          %p1227 = pneg %p339
        $region78: #{tpu_custom_call.1} parent=71 // pred_check_branch
          %1229 = sbr.rel (%p1227) target = $region80
        $region79: #{tpu_custom_call.1} parent=71 // pred_region
          %s1231 = ssub.s32 128, 128
          %1232 = vsyncadd %s1218, %s1231
          %s1233 = smul.addr %s33, 128
          %s1234 = scalar_lea.hbm %s13, %s1233
          %s1236 = sshll.u32 %s1221, 4
          %s1237 = int_to_ptr.vmem [resolvable:$true] %s1236
          %1239 = dma.vmem_to_hbm [thread:$0]  %s1237, 128, %s1234, %s1218
        $region80: #{tpu_custom_call.1} parent=71 // pred_fallthru
          _
        // Predicated region
        $region81: #{tpu_custom_call.1} parent=71 // pred_check
          %p1240 = pneg %p365
        $region82: #{tpu_custom_call.1} parent=71 // pred_check_branch
          %1242 = sbr.rel (%p1240) target = $region84
        $region83: #{tpu_custom_call.1} parent=71 // pred_region
          %s1244 = ssub.s32 128, 128
          %1245 = vsyncadd %s1223, %s1244
          %s1246 = smul.addr %s33, 128
          %s1247 = scalar_lea.hbm %s14, %s1246
          %s1249 = sshll.u32 %s1226, 4
          %s1250 = int_to_ptr.vmem [resolvable:$true] %s1249
          %1252 = dma.vmem_to_hbm [thread:$0]  %s1250, 128, %s1247, %s1223
        $region84: #{tpu_custom_call.1} parent=71 // pred_fallthru
          _
      $region72: #{tpu_custom_call.1} parent=5 // pred_fallthru
        _
      %p1253 = scmp.le.s32.totalorder 2, %s28
      // Predicated region
      $region85: #{tpu_custom_call.1} parent=5 // pred_check
        %p1254 = pneg %p1253
      $region86: #{tpu_custom_call.1} parent=5 // pred_check_branch
        %1256 = sbr.rel (%p1254) target = $region88
      $region87: #{tpu_custom_call.1} parent=5 // pred_region
        %s1257 = ssub.s32 %s28, 2
        // Predicated region
        $region89: #{tpu_custom_call.1} parent=87 // pred_check
          %p1258 = pneg %p345
        $region90: #{tpu_custom_call.1} parent=87 // pred_check_branch
          %1260 = sbr.rel (%p1258) target = $region92
        $region91: #{tpu_custom_call.1} parent=87 // pred_region
          %s1261 = sand.u32 %s330, 1
          %s1262 = scalar_lea.sflag [#allocation4], %s1261
          %s1263 = sand.u32 %s330, 1
          %s1264 = smul.addr %s1263, 8
          %s1265 = scalar_lea.vmem [#allocation5], %s1264
          %1266 = dma.done %s1262, 128
        $region92: #{tpu_custom_call.1} parent=87 // pred_fallthru
          _
        // Predicated region
        $region93: #{tpu_custom_call.1} parent=87 // pred_check
          %p1267 = pneg %p371
        $region94: #{tpu_custom_call.1} parent=87 // pred_check_branch
          %1269 = sbr.rel (%p1267) target = $region96
        $region95: #{tpu_custom_call.1} parent=87 // pred_region
          %s1270 = sand.u32 %s356, 1
          %s1271 = scalar_lea.sflag [#allocation7], %s1270
          %s1272 = sand.u32 %s356, 1
          %s1273 = smul.addr %s1272, 8
          %s1274 = scalar_lea.vmem [#allocation6], %s1273
          %1275 = dma.done %s1271, 128
        $region96: #{tpu_custom_call.1} parent=87 // pred_fallthru
          _
      $region88: #{tpu_custom_call.1} parent=5 // pred_fallthru
        _
    $region6: #{tpu_custom_call.1} parent=1 // loop_footer
      %s32 = sadd.s32 1, %s28
    $region7: #{tpu_custom_call.1} parent=1 // loop_footer_branch
      %27 = sbr.rel target = $region3
    $region8: #{tpu_custom_call.1} parent=1 // loop_exit
      _
    %1276 = vsyncpa [#allocation3], 1
    %s1277 = scalar_lea.sflag [#allocation3], 1
    %1278 = vsyncpa %s1277, 1
    %1279 = vsyncpa [#allocation4], 1
    %s1280 = scalar_lea.sflag [#allocation4], 1
    %1281 = vsyncpa %s1280, 1
    %1282 = vsyncpa [#allocation7], 1
    %s1283 = scalar_lea.sflag [#allocation7], 1
    %1284 = vsyncpa %s1283, 1

</llo_original>
